<compile_context>
chip_gen: v7x
topology: tpu7x:2x2x1
jax: 0.10.0
libtpu: 0.0.40
codegen_flags: <defaults>
</compile_context>

<pallas_src>
import functools

import jax
import jax.numpy as jnp
from jax.experimental import pallas as pl
from jax.experimental.pallas import tpu as pltpu

_LANE = 128
_VMEM_LIMIT = 32 * 1024 * 1024   # > all default scoped-VMEM limits, < v7x 64 MiB


def _round_up(n, m):
    return ((n + m - 1) // m) * m


def _pad_to(x, axis, target):
    pad = target - x.shape[axis]
    if pad <= 0:
        return x
    widths = [(0, 0)] * x.ndim
    widths[axis] = (0, pad)
    return jnp.pad(x, widths)


def _im2col_3x3(images_nchw):
    """NCHW -> [B, H*W, 9*Cin] bf16 SAME-padded 3x3 patches.

    Tap-major layout ((kh*3 + kw)*Cin + ci) matches conv_w's [9*Cin, F] rows.
    Conv zero-padding is baked into the patches, so the kernel needs no
    validity masks and no shifted (sublane-misaligned) slices.
    """
    b, cin, h, w = images_nchw.shape
    x = jnp.transpose(images_nchw, (0, 2, 3, 1)).astype(jnp.bfloat16)   # NHWC
    xp = jnp.pad(x, ((0, 0), (1, 1), (1, 1), (0, 0)))
    taps = [xp[:, kh:kh + h, kw:kw + w, :] for kh in range(3) for kw in range(3)]
    return jnp.concatenate(taps, axis=-1).reshape(b, h * w, 9 * cin)


# ---------------------------------------------------------------------------
# Kernel
# ---------------------------------------------------------------------------
def _backbone_head_kernel(x_ref, cw_ref, cb_ref, lw_ref, lb_ref, out_ref,
                          pooled_ref, *, bb, hw):
    """Fused stand-in backbone (3x3 conv + bias + ReLU + global avg pool) and
    Linear head, for BB images per grid step.

    x_ref:      [1, BB*HW, 9*Cin] bf16  im2col patches
    cw_ref:     [9*Cin, Fp]       bf16  conv weight (single fused K contraction)
    cb_ref:     [1, Fp]           f32   conv bias
    lw_ref:     [Fp, Hp]          bf16  linear weight
    lb_ref:     [1, Hp]           f32   linear bias
    out_ref:    [1, BB, Hp]       f32   pre-BN linear activations
    pooled_ref: [BB, Fp]          f32   VMEM scratch (pooled features)
    """
    # One fused K=9*Cin MXU contraction; bf16 operands, f32 accumulation.
    y = jnp.dot(x_ref[0], cw_ref[...], preferred_element_type=jnp.float32)
    y = jnp.maximum(y + cb_ref[...], 0.0)                 # bias + ReLU (f32 VPU)

    # Per-image global average pool (static unroll; sublane-aligned slices).
    for i in range(bb):
        pooled_ref[pl.ds(i, 1), :] = jnp.sum(
            y[i * hw:(i + 1) * hw, :], axis=0, keepdims=True)
    pooled = pooled_ref[...] * (1.0 / hw)                 # [BB, Fp] f32

    # Head Linear: bf16 operands (weight-bandwidth bound GEMV at real scale),
    # f32 accumulate.
    head = jnp.dot(pooled.astype(jnp.bfloat16), lw_ref[...],
                   preferred_element_type=jnp.float32)    # [BB, Hp]
    out_ref[0] = head + lb_ref[...]


def _run_backbone(x_flat, cw, cb, lw, lb, *, bb, hw, nsteps, k9, feat_p, hid_p,
                  single_buffer_weights):
    if single_buffer_weights:
        # Grid-invariant operands: constant index_map + single-buffering.
        wspec = lambda shape: pl.BlockSpec(shape, lambda i: (0, 0),
                                           pipeline_mode=pl.Buffered(1))
    else:
        wspec = lambda shape: pl.BlockSpec(shape, lambda i: (0, 0))
    kernel = functools.partial(_backbone_head_kernel, bb=bb, hw=hw)
    return pl.pallas_call(
        kernel,
        grid=(nsteps,),
        in_specs=[
            pl.BlockSpec((1, bb * hw, k9), lambda i: (i, 0, 0)),
            wspec((k9, feat_p)),
            wspec((1, feat_p)),
            wspec((feat_p, hid_p)),
            wspec((1, hid_p)),
        ],
        out_specs=pl.BlockSpec((1, bb, hid_p), lambda i: (i, 0, 0)),
        out_shape=jax.ShapeDtypeStruct((nsteps, bb, hid_p), jnp.float32),
        scratch_shapes=[pltpu.VMEM((bb, feat_p), jnp.float32)],
        compiler_params=pltpu.CompilerParams(
            dimension_semantics=("parallel",),        # batch -> both TCs on v7x
            vmem_limit_bytes=_VMEM_LIMIT),
    )(x_flat, cw, cb, lw, lb)


# ---------------------------------------------------------------------------
# Wrapper (EncoderCNN.forward)
# ---------------------------------------------------------------------------
def encoder_cnn_forward(images, conv_w, conv_b, lin_w, lin_b, bn_gamma, bn_beta,
                        eps=1e-5):
    """images: [B, Cin, H, W] (NCHW).  Returns [B, hidden]."""
    b, cin, h, w = images.shape
    feat = conv_w.shape[1]
    hidden = lin_w.shape[1]
    hw = h * w
    k9 = 9 * cin
    feat_p = _round_up(feat, _LANE)
    hid_p = _round_up(hidden, _LANE)

    # Batch blocking: BB images per grid step amortizes per-step overhead and
    # makes the head matmul M=BB; keep >=2 grid steps when possible so the
    # "parallel" batch axis can use both v7x TensorCores.
    if b <= 1:
        bb, nsteps = 1, 1
    else:
        bb = max(1, min(8, (b + 1) // 2))
        nsteps = pl.cdiv(b, bb)
    b_pad = bb * nsteps

    patches = _im2col_3x3(images)                          # [B, HW, 9*Cin] bf16
    patches = _pad_to(patches, 0, b_pad)
    x_flat = patches.reshape(nsteps, bb * hw, k9)

    # Lane-pad weights; matmul operands in bf16, everything else f32.
    cw = _pad_to(conv_w, 1, feat_p).astype(jnp.bfloat16)             # [9Cin,Fp]
    cb = _pad_to(conv_b.astype(jnp.float32).reshape(1, feat), 1, feat_p)
    lw = _pad_to(_pad_to(lin_w, 1, hid_p), 0, feat_p).astype(jnp.bfloat16)
    lb = _pad_to(lin_b.astype(jnp.float32).reshape(1, hidden), 1, hid_p)

    kwargs = dict(bb=bb, hw=hw, nsteps=nsteps, k9=k9, feat_p=feat_p, hid_p=hid_p)
    try:
        pre_bn = _run_backbone(x_flat, cw, cb, lw, lb,
                               single_buffer_weights=True, **kwargs)
    except Exception:
        # Fallback for environments without BlockSpec pipeline_mode support.
        pre_bn = _run_backbone(x_flat, cw, cb, lw, lb,
                               single_buffer_weights=False, **kwargs)

    z = pre_bn.reshape(b_pad, hid_p)[:b, :hidden]

    # BatchNorm1d with batch statistics (train-mode forward), guarded exactly
    # as in EncoderCNN.forward.  Plain JAX per perf review: a third kernel
    # launch + DMA would dwarf the [B, hidden] math (XLA fuses with the slice).
    if b != 1:
        gamma = bn_gamma.astype(jnp.float32).reshape(1, hidden)
        beta = bn_beta.astype(jnp.float32).reshape(1, hidden)
        mean = jnp.mean(z, axis=0, keepdims=True)
        var = jnp.mean(jnp.square(z - mean), axis=0, keepdims=True)  # biased, as torch BN
        z = (z - mean) * jax.lax.rsqrt(var + eps) * gamma + beta
    return z


# ---------------------------------------------------------------------------
# Pure-JAX reference (mirrors the kernel's bf16 matmul-operand quantization;
# conv operands, pooled features and linear weights bf16, f32 accumulation)
# ---------------------------------------------------------------------------
def _reference(images, conv_w, conv_b, lin_w, lin_b, gamma, beta, eps=1e-5):
    b, cin, h, w = images.shape
    feat = conv_w.shape[1]
    hidden = lin_w.shape[1]
    hw = h * w
    patches = _im2col_3x3(images).reshape(b * hw, 9 * cin)
    y = jnp.dot(patches, conv_w.astype(jnp.bfloat16),
                preferred_element_type=jnp.float32)
    y = jnp.maximum(y + conv_b.astype(jnp.float32).reshape(1, feat), 0.0)
    pooled = jnp.sum(y.reshape(b, hw, feat), axis=1) * (1.0 / hw)
    z = jnp.dot(pooled.astype(jnp.bfloat16), lin_w.astype(jnp.bfloat16),
                preferred_element_type=jnp.float32) + lin_b.reshape(1, hidden)
    if b != 1:
        m = jnp.mean(z, axis=0, keepdims=True)
        v = jnp.mean(jnp.square(z - m), axis=0, keepdims=True)
        z = ((z - m) * jax.lax.rsqrt(v + eps) * gamma.reshape(1, hidden)
             + beta.reshape(1, hidden))
    return z


# ---------------------------------------------------------------------------
if __name__ == "__main__":
    B, CIN, H, W = 4, 4, 16, 16      # images: NCHW
    FEAT = 32                        # stand-in for resnet.fc.in_features (=2048)
    HIDDEN = 32                      # hidden_size

    key = jax.random.PRNGKey(0)
    k_img, k_cw, k_cb, k_lw, k_lb = jax.random.split(key, 5)
    # Give each batch element a distinct offset: global-average-pooled features
    # of i.i.d. random images are nearly identical, which would make BatchNorm's
    # per-feature batch std (the comparison denominator) ill-conditioned.
    images = (jax.random.normal(k_img, (B, CIN, H, W), jnp.float32)
              + jnp.arange(B, dtype=jnp.float32)[:, None, None, None])
    conv_w = 0.1 * jax.random.normal(k_cw, (9 * CIN, FEAT), jnp.float32)
    conv_b = 0.1 * jax.random.normal(k_cb, (1, FEAT), jnp.float32)
    lin_w = 0.1 * jax.random.normal(k_lw, (FEAT, HIDDEN), jnp.float32)
    lin_b = 0.1 * jax.random.normal(k_lb, (1, HIDDEN), jnp.float32)
    bn_gamma = jnp.ones((1, HIDDEN), jnp.float32)    # fresh BatchNorm1d init
    bn_beta = jnp.zeros((1, HIDDEN), jnp.float32)

    out = encoder_cnn_forward(images, conv_w, conv_b, lin_w, lin_b,
                              bn_gamma, bn_beta)
    out = jax.block_until_ready(out)

    ref = _reference(images, conv_w, conv_b, lin_w, lin_b, bn_gamma, bn_beta)
    assert out.shape == (B, HIDDEN), out.shape
    err = jnp.max(jnp.abs(out - ref))
    # BN divides by the per-feature batch std, which amplifies bf16 matmul
    # rounding differences; 2e-2 on O(1) normalized outputs is ample headroom.
    assert jnp.allclose(out, ref, atol=2e-2, rtol=2e-2), f"max abs err {err}"
    print("KERNEL_OK")
</pallas_src>

<mosaic_0001>
module attributes {stable_mosaic.version = 11 : i64} {
  func.func @_backbone_head_kernel(%arg0: i32, %arg1: memref<1x512x36xbf16, #tpu.memory_space<vmem>>, %arg2: memref<36x128xbf16, #tpu.memory_space<vmem>>, %arg3: memref<1x128xf32, #tpu.memory_space<vmem>>, %arg4: memref<128x128xbf16, #tpu.memory_space<vmem>>, %arg5: memref<1x128xf32, #tpu.memory_space<vmem>>, %arg6: memref<1x2x128xf32, #tpu.memory_space<vmem>>, %arg7: memref<2x128xf32, #tpu.memory_space<vmem>>) attributes {dimension_semantics = [#tpu.dimension_semantics<parallel>], iteration_bounds = array<i64: 2>, scalar_prefetch = 0 : i64, scratch_operands = 1 : i64, tpu.core_type = #tpu.core_type<tc>, window_params = [{transform_indices = @transform_0, window_bounds = array<i64: 1, 512, 36>}, {pipeline_mode = #tpu.pipeline_mode<synchronous>, transform_indices = @transform_1, window_bounds = array<i64: 36, 128>}, {pipeline_mode = #tpu.pipeline_mode<synchronous>, transform_indices = @transform_2, window_bounds = array<i64: 1, 128>}, {pipeline_mode = #tpu.pipeline_mode<synchronous>, transform_indices = @transform_3, window_bounds = array<i64: 128, 128>}, {pipeline_mode = #tpu.pipeline_mode<synchronous>, transform_indices = @transform_4, window_bounds = array<i64: 1, 128>}, {transform_indices = @transform_5, window_bounds = array<i64: 1, 2, 128>}]} {
    %c0 = arith.constant 0 : index
    %c0_0 = arith.constant 0 : index
    %c0_1 = arith.constant 0 : index
    %0 = vector.load %arg1[%c0, %c0_0, %c0_1] : memref<1x512x36xbf16, #tpu.memory_space<vmem>>, vector<1x512x36xbf16>
    %1 = vector.shape_cast %0 : vector<1x512x36xbf16> to vector<512x36xbf16>
    %c0_2 = arith.constant 0 : index
    %c0_3 = arith.constant 0 : index
    %2 = vector.load %arg2[%c0_2, %c0_3] : memref<36x128xbf16, #tpu.memory_space<vmem>>, vector<36x128xbf16>
    %cst = arith.constant dense<0.000000e+00> : vector<512x128xf32>
    %3 = tpu.matmul %1, %2, %cst {dimension_numbers = #tpu.dot_dimension_numbers<[1], [0], [0], [1], [0, 0, 1, 1], [], []>} : vector<512x36xbf16>, vector<36x128xbf16>, vector<512x128xf32> -> vector<512x128xf32>
    %c0_4 = arith.constant 0 : index
    %c0_5 = arith.constant 0 : index
    %4 = vector.load %arg3[%c0_4, %c0_5] : memref<1x128xf32, #tpu.memory_space<vmem>>, vector<1x128xf32>
    %5 = vector.broadcast %4 : vector<1x128xf32> to vector<512x128xf32>
    %6 = arith.addf %3, %5 : vector<512x128xf32>
    %cst_6 = arith.constant 0.000000e+00 : f32
    %7 = vector.broadcast %cst_6 : f32 to vector<512x128xf32>
    %8 = arith.maximumf %6, %7 : vector<512x128xf32>
    %9 = vector.extract_strided_slice %8 {offsets = [0, 0], sizes = [256, 128], strides = [1, 1]} : vector<512x128xf32> to vector<256x128xf32>
    %cst_7 = arith.constant dense<0.000000e+00> : vector<128xf32>
    %10 = vector.multi_reduction <add>, %9, %cst_7 [0] : vector<256x128xf32> to vector<128xf32>
    %11 = vector.shape_cast %10 : vector<128xf32> to vector<1x128xf32>
    %c0_8 = arith.constant 0 : index
    %c0_9 = arith.constant 0 : index
    %12 = vector.load %arg7[%c0_8, %c0_9] : memref<2x128xf32, #tpu.memory_space<vmem>>, vector<1x128xf32>
    tpu.vector_store %arg7[%c0_8, %c0_9], %11 {strides = array<i32>} : memref<2x128xf32, #tpu.memory_space<vmem>>, vector<1x128xf32>,
    %13 = vector.extract_strided_slice %8 {offsets = [256, 0], sizes = [256, 128], strides = [1, 1]} : vector<512x128xf32> to vector<256x128xf32>
    %cst_10 = arith.constant dense<0.000000e+00> : vector<128xf32>
    %14 = vector.multi_reduction <add>, %13, %cst_10 [0] : vector<256x128xf32> to vector<128xf32>
    %15 = vector.shape_cast %14 : vector<128xf32> to vector<1x128xf32>
    %c1 = arith.constant 1 : index
    %c0_11 = arith.constant 0 : index
    %16 = vector.load %arg7[%c1, %c0_11] : memref<2x128xf32, #tpu.memory_space<vmem>>, vector<1x128xf32>
    tpu.vector_store %arg7[%c1, %c0_11], %15 {strides = array<i32>} : memref<2x128xf32, #tpu.memory_space<vmem>>, vector<1x128xf32>,
    %c0_12 = arith.constant 0 : index
    %c0_13 = arith.constant 0 : index
    %17 = vector.load %arg7[%c0_12, %c0_13] : memref<2x128xf32, #tpu.memory_space<vmem>>, vector<2x128xf32>
    %cst_14 = arith.constant 3.906250e-03 : f32
    %18 = vector.broadcast %cst_14 : f32 to vector<2x128xf32>
    %19 = arith.mulf %17, %18 : vector<2x128xf32>
    %20 = arith.truncf %19 : vector<2x128xf32> to vector<2x128xbf16>
    %c0_15 = arith.constant 0 : index
    %c0_16 = arith.constant 0 : index
    %21 = vector.load %arg4[%c0_15, %c0_16] : memref<128x128xbf16, #tpu.memory_space<vmem>>, vector<128x128xbf16>
    %cst_17 = arith.constant dense<0.000000e+00> : vector<2x128xf32>
    %22 = tpu.matmul %20, %21, %cst_17 {dimension_numbers = #tpu.dot_dimension_numbers<[1], [0], [0], [1], [0, 0, 1, 1], [], []>} : vector<2x128xbf16>, vector<128x128xbf16>, vector<2x128xf32> -> vector<2x128xf32>
    %c0_18 = arith.constant 0 : index
    %c0_19 = arith.constant 0 : index
    %23 = vector.load %arg5[%c0_18, %c0_19] : memref<1x128xf32, #tpu.memory_space<vmem>>, vector<1x128xf32>
    %24 = vector.broadcast %23 : vector<1x128xf32> to vector<2x128xf32>
    %25 = arith.addf %22, %24 : vector<2x128xf32>
    %c0_20 = arith.constant 0 : index
    %c0_21 = arith.constant 0 : index
    %c0_22 = arith.constant 0 : index
    %26 = vector.load %arg6[%c0_20, %c0_21, %c0_22] : memref<1x2x128xf32, #tpu.memory_space<vmem>>, vector<1x2x128xf32>
    %27 = vector.shape_cast %26 : vector<1x2x128xf32> to vector<2x128xf32>
    %28 = vector.shape_cast %25 : vector<2x128xf32> to vector<1x2x128xf32>
    tpu.vector_store %arg6[%c0_20, %c0_21, %c0_22], %28 {strides = array<i32>} : memref<1x2x128xf32, #tpu.memory_space<vmem>>, vector<1x2x128xf32>,
    return
  }
  func.func @transform_0(%arg0: i32) -> (i32, i32, i32) {
    %c0_i32 = arith.constant 0 : i32
    %c0_i32_0 = arith.constant 0 : i32
    %c0_i32_1 = arith.constant 0 : i32
    return %arg0, %c0_i32, %c0_i32_0 : i32, i32, i32
  }
  func.func @transform_1(%arg0: i32) -> (i32, i32) {
    %c0_i32 = arith.constant 0 : i32
    %c0_i32_0 = arith.constant 0 : i32
    %c0_i32_1 = arith.constant 0 : i32
    return %c0_i32, %c0_i32_0 : i32, i32
  }
  func.func @transform_2(%arg0: i32) -> (i32, i32) {
    %c0_i32 = arith.constant 0 : i32
    %c0_i32_0 = arith.constant 0 : i32
    %c0_i32_1 = arith.constant 0 : i32
    return %c0_i32, %c0_i32_0 : i32, i32
  }
  func.func @transform_3(%arg0: i32) -> (i32, i32) {
    %c0_i32 = arith.constant 0 : i32
    %c0_i32_0 = arith.constant 0 : i32
    %c0_i32_1 = arith.constant 0 : i32
    return %c0_i32, %c0_i32_0 : i32, i32
  }
  func.func @transform_4(%arg0: i32) -> (i32, i32) {
    %c0_i32 = arith.constant 0 : i32
    %c0_i32_0 = arith.constant 0 : i32
    %c0_i32_1 = arith.constant 0 : i32
    return %c0_i32, %c0_i32_0 : i32, i32
  }
  func.func @transform_5(%arg0: i32) -> (i32, i32, i32) {
    %c0_i32 = arith.constant 0 : i32
    %c0_i32_0 = arith.constant 0 : i32
    %c0_i32_1 = arith.constant 0 : i32
    return %arg0, %c0_i32, %c0_i32_0 : i32, i32, i32
  }
}

module attributes {stable_mosaic.version = 11 : i64} {
  func.func @_backbone_head_kernel(%arg0: i32, %arg1: memref<1x512x36xbf16, #tpu.memory_space<vmem>>, %arg2: memref<36x128xbf16, #tpu.memory_space<vmem>>, %arg3: memref<1x128xf32, #tpu.memory_space<vmem>>, %arg4: memref<128x128xbf16, #tpu.memory_space<vmem>>, %arg5: memref<1x128xf32, #tpu.memory_space<vmem>>, %arg6: memref<1x2x128xf32, #tpu.memory_space<vmem>>, %arg7: memref<2x128xf32, #tpu.memory_space<vmem>>) attributes {dimension_semantics = [#tpu.dimension_semantics<parallel>], iteration_bounds = array<i64: 2>, scalar_prefetch = 0 : i64, scratch_operands = 1 : i64, tpu.core_type = #tpu.core_type<tc>, window_params = [{transform_indices = @transform_0, window_bounds = array<i64: 1, 512, 36>}, {pipeline_mode = #tpu.pipeline_mode<synchronous>, transform_indices = @transform_1, window_bounds = array<i64: 36, 128>}, {pipeline_mode = #tpu.pipeline_mode<synchronous>, transform_indices = @transform_2, window_bounds = array<i64: 1, 128>}, {pipeline_mode = #tpu.pipeline_mode<synchronous>, transform_indices = @transform_3, window_bounds = array<i64: 128, 128>}, {pipeline_mode = #tpu.pipeline_mode<synchronous>, transform_indices = @transform_4, window_bounds = array<i64: 1, 128>}, {transform_indices = @transform_5, window_bounds = array<i64: 1, 2, 128>}]} {
    %c0 = arith.constant 0 : index
    %c0_0 = arith.constant 0 : index
    %c0_1 = arith.constant 0 : index
    %0 = vector.load %arg1[%c0, %c0_0, %c0_1] : memref<1x512x36xbf16, #tpu.memory_space<vmem>>, vector<1x512x36xbf16>
    %1 = vector.shape_cast %0 : vector<1x512x36xbf16> to vector<512x36xbf16>
    %c0_2 = arith.constant 0 : index
    %c0_3 = arith.constant 0 : index
    %2 = vector.load %arg2[%c0_2, %c0_3] : memref<36x128xbf16, #tpu.memory_space<vmem>>, vector<36x128xbf16>
    %cst = arith.constant dense<0.000000e+00> : vector<512x128xf32>
    %3 = tpu.matmul %1, %2, %cst {dimension_numbers = #tpu.dot_dimension_numbers<[1], [0], [0], [1], [0, 0, 1, 1], [], []>} : vector<512x36xbf16>, vector<36x128xbf16>, vector<512x128xf32> -> vector<512x128xf32>
    %c0_4 = arith.constant 0 : index
    %c0_5 = arith.constant 0 : index
    %4 = vector.load %arg3[%c0_4, %c0_5] : memref<1x128xf32, #tpu.memory_space<vmem>>, vector<1x128xf32>
    %5 = vector.broadcast %4 : vector<1x128xf32> to vector<512x128xf32>
    %6 = arith.addf %3, %5 : vector<512x128xf32>
    %cst_6 = arith.constant 0.000000e+00 : f32
    %7 = vector.broadcast %cst_6 : f32 to vector<512x128xf32>
    %8 = arith.maximumf %6, %7 : vector<512x128xf32>
    %9 = vector.extract_strided_slice %8 {offsets = [0, 0], sizes = [256, 128], strides = [1, 1]} : vector<512x128xf32> to vector<256x128xf32>
    %cst_7 = arith.constant dense<0.000000e+00> : vector<128xf32>
    %10 = vector.multi_reduction <add>, %9, %cst_7 [0] : vector<256x128xf32> to vector<128xf32>
    %11 = vector.shape_cast %10 : vector<128xf32> to vector<1x128xf32>
    %c0_8 = arith.constant 0 : index
    %c0_9 = arith.constant 0 : index
    %12 = vector.load %arg7[%c0_8, %c0_9] : memref<2x128xf32, #tpu.memory_space<vmem>>, vector<1x128xf32>
    tpu.vector_store %arg7[%c0_8, %c0_9], %11 {strides = array<i32>} : memref<2x128xf32, #tpu.memory_space<vmem>>, vector<1x128xf32>,
    %13 = vector.extract_strided_slice %8 {offsets = [256, 0], sizes = [256, 128], strides = [1, 1]} : vector<512x128xf32> to vector<256x128xf32>
    %cst_10 = arith.constant dense<0.000000e+00> : vector<128xf32>
    %14 = vector.multi_reduction <add>, %13, %cst_10 [0] : vector<256x128xf32> to vector<128xf32>
    %15 = vector.shape_cast %14 : vector<128xf32> to vector<1x128xf32>
    %c1 = arith.constant 1 : index
    %c0_11 = arith.constant 0 : index
    %16 = vector.load %arg7[%c1, %c0_11] : memref<2x128xf32, #tpu.memory_space<vmem>>, vector<1x128xf32>
    tpu.vector_store %arg7[%c1, %c0_11], %15 {strides = array<i32>} : memref<2x128xf32, #tpu.memory_space<vmem>>, vector<1x128xf32>,
    %c0_12 = arith.constant 0 : index
    %c0_13 = arith.constant 0 : index
    %17 = vector.load %arg7[%c0_12, %c0_13] : memref<2x128xf32, #tpu.memory_space<vmem>>, vector<2x128xf32>
    %cst_14 = arith.constant 3.906250e-03 : f32
    %18 = vector.broadcast %cst_14 : f32 to vector<2x128xf32>
    %19 = arith.mulf %17, %18 : vector<2x128xf32>
    %20 = arith.truncf %19 : vector<2x128xf32> to vector<2x128xbf16>
    %c0_15 = arith.constant 0 : index
    %c0_16 = arith.constant 0 : index
    %21 = vector.load %arg4[%c0_15, %c0_16] : memref<128x128xbf16, #tpu.memory_space<vmem>>, vector<128x128xbf16>
    %cst_17 = arith.constant dense<0.000000e+00> : vector<2x128xf32>
    %22 = tpu.matmul %20, %21, %cst_17 {dimension_numbers = #tpu.dot_dimension_numbers<[1], [0], [0], [1], [0, 0, 1, 1], [], []>} : vector<2x128xbf16>, vector<128x128xbf16>, vector<2x128xf32> -> vector<2x128xf32>
    %c0_18 = arith.constant 0 : index
    %c0_19 = arith.constant 0 : index
    %23 = vector.load %arg5[%c0_18, %c0_19] : memref<1x128xf32, #tpu.memory_space<vmem>>, vector<1x128xf32>
    %24 = vector.broadcast %23 : vector<1x128xf32> to vector<2x128xf32>
    %25 = arith.addf %22, %24 : vector<2x128xf32>
    %c0_20 = arith.constant 0 : index
    %c0_21 = arith.constant 0 : index
    %c0_22 = arith.constant 0 : index
    %26 = vector.load %arg6[%c0_20, %c0_21, %c0_22] : memref<1x2x128xf32, #tpu.memory_space<vmem>>, vector<1x2x128xf32>
    %27 = vector.shape_cast %26 : vector<1x2x128xf32> to vector<2x128xf32>
    %28 = vector.shape_cast %25 : vector<2x128xf32> to vector<1x2x128xf32>
    tpu.vector_store %arg6[%c0_20, %c0_21, %c0_22], %28 {strides = array<i32>} : memref<1x2x128xf32, #tpu.memory_space<vmem>>, vector<1x2x128xf32>,
    return
  }
  func.func @transform_0(%arg0: i32) -> (i32, i32, i32) {
    %c0_i32 = arith.constant 0 : i32
    %c0_i32_0 = arith.constant 0 : i32
    %c0_i32_1 = arith.constant 0 : i32
    return %arg0, %c0_i32, %c0_i32_0 : i32, i32, i32
  }
  func.func @transform_1(%arg0: i32) -> (i32, i32) {
    %c0_i32 = arith.constant 0 : i32
    %c0_i32_0 = arith.constant 0 : i32
    %c0_i32_1 = arith.constant 0 : i32
    return %c0_i32, %c0_i32_0 : i32, i32
  }
  func.func @transform_2(%arg0: i32) -> (i32, i32) {
    %c0_i32 = arith.constant 0 : i32
    %c0_i32_0 = arith.constant 0 : i32
    %c0_i32_1 = arith.constant 0 : i32
    return %c0_i32, %c0_i32_0 : i32, i32
  }
  func.func @transform_3(%arg0: i32) -> (i32, i32) {
    %c0_i32 = arith.constant 0 : i32
    %c0_i32_0 = arith.constant 0 : i32
    %c0_i32_1 = arith.constant 0 : i32
    return %c0_i32, %c0_i32_0 : i32, i32
  }
  func.func @transform_4(%arg0: i32) -> (i32, i32) {
    %c0_i32 = arith.constant 0 : i32
    %c0_i32_0 = arith.constant 0 : i32
    %c0_i32_1 = arith.constant 0 : i32
    return %c0_i32, %c0_i32_0 : i32, i32
  }
  func.func @transform_5(%arg0: i32) -> (i32, i32, i32) {
    %c0_i32 = arith.constant 0 : i32
    %c0_i32_0 = arith.constant 0 : i32
    %c0_i32_1 = arith.constant 0 : i32
    return %arg0, %c0_i32, %c0_i32_0 : i32, i32, i32
  }
}

</mosaic_0001>

<llo_original>
// kernel: tpu_custom_call.1
$region0: #{tpu_custom_call.1}
  #allocation0 [shape = 'u32[]', space=smem, size = 0x4, offset = 0x4, fixed_abs, tag = 'smem constant byte address 0x4 - core index']
  #allocation1 [shape = 'u32[144,128]{1,0:T(1,128)}', space=vmem, size = 0x12000, scoped, tag = 'internal scratch']
  #allocation2 [shape = 'f32[2,128]{1,0:T(2,128)}', space=vmem, size = 0x400, scoped, tag = 'scratch operand']
  %s0 = inlined_call_operand.vmem [shape: bf16[2,512,36], index: 0, kind: input, shape index: {}]
  %s1 = inlined_call_operand.vmem [shape: bf16[36,128], index: 1, kind: input, shape index: {}]
  %s2 = inlined_call_operand.vmem [shape: f32[1,128], index: 2, kind: input, shape index: {}]
  %s3 = inlined_call_operand.vmem [shape: bf16[128,128], index: 3, kind: input, shape index: {}]
  %s4 = inlined_call_operand.vmem [shape: f32[1,128], index: 4, kind: input, shape index: {}]
  %s5 = inlined_call_operand.hbm [shape: f32[2,2,128], index: 5, kind: output, shape index: {}]
  %s6 = sld [smem:[#allocation0]]
  $region53: #{tpu_custom_call.1} parent=0
    _
  %s8 = ssub.s32 1, %s6
  %s9 = scalar_select 0, %s8, %s6
  $region1: #{tpu_custom_call.1} parent=0
    #allocation3 [shape = 'u8[2048]{0}', space=vmem, size = 0x800, scoped, tag = 'output window, operand 0']
    #allocation4 [shape = 's32[2]{0}', space=sflag, size = 0x8, scoped, tag = 'scoped memory for tpu_custom_call.1']
    %10 = vsyncpa [#allocation4], 0
    %s11 = scalar_lea.sflag [#allocation4], 1
    %12 = vsyncpa %s11, 0
    loop: start=0, step=1, limit=4
    $region2: #{tpu_custom_call.1} parent=1 // loop_pre_header
      _
    $region3: #{tpu_custom_call.1} parent=1 // loop_header
      %s14 = sphi 0, %s18
      %p15 = scmp.ge.s32.totalorder %s14, 4
      %s24 = sphi 0, %s26
      %s27 = sphi 0, %s24
      %s28 = sphi 0, %s27
      %s44 = sphi 0, %s28
      %s48 = sphi 0, %s48
      %s50 = sphi 0, %s48
      %s51 = sphi 0, %s50
      %s65 = sphi 0, %s51
      %s69 = sphi 0, %s69
      %s71 = sphi 0, %s69
      %s72 = sphi 0, %s71
      %s86 = sphi 0, %s72
      %s90 = sphi 0, %s90
      %s92 = sphi 0, %s90
      %s93 = sphi 0, %s92
      %s107 = sphi 0, %s93
      %s111 = sphi 0, %s111
      %s113 = sphi 0, %s111
      %s114 = sphi 0, %s113
      %s128 = sphi 0, %s114
      %s134 = sphi 0, %s136
      %s137 = sphi 0, %s134
      %s138 = sphi 0, %s137
      %s154 = sphi 0, %s138
    $region4: #{tpu_custom_call.1} parent=1 // loop_header_branch
      %17 = sbr.rel (%p15) target = $region8
    $region5: #{tpu_custom_call.1} parent=1 // loop_body
      %s19 = ssub.s32 %s14, 1
      %s20 = ssub.s32 %s14, 2
      %s21 = sadd.s32 %s14, 1
      %s22 = ssub.s32 %s14, %s21
      %p23 = scmp.eq.s32.totalorder %s22, 0
      %s25 = sadd.s32 %s24, 1
      %s26 = scalar_select %p23, %s24, %s25
      %p29 = pneg %p23
      %p30 = scmp.eq.s32.totalorder %s14, 1
      %p31 = por %p29, %p30
      %p32 = scmp.ne.s32.totalorder %s24, %s27
      %p33 = scmp.eq.s32.totalorder %s14, 0
      %p34 = por %p32, %p33
      %p35 = scmp.ne.s32.totalorder %s24, %s27
      %p36 = scmp.eq.s32.totalorder %s19, 1
      %p37 = por %p35, %p36
      %p38 = scmp.ne.s32.totalorder %s27, %s28
      %p39 = scmp.eq.s32.totalorder %s19, 0
      %p40 = por %p38, %p39
      %p41 = scmp.ne.s32.totalorder %s27, %s28
      %p42 = scmp.eq.s32.totalorder %s20, 1
      %p43 = por %p41, %p42
      %p45 = scmp.ne.s32.totalorder %s28, %s44
      %p46 = scmp.eq.s32.totalorder %s20, 0
      %p47 = por %p45, %p46
      %s49 = sadd.s32 %s48, 1
      %p52 = scmp.eq.s32.totalorder %s14, 1
      %p53 = scmp.ne.s32.totalorder %s48, %s50
      %p54 = scmp.eq.s32.totalorder %s14, 0
      %p55 = por %p53, %p54
      %p56 = scmp.ne.s32.totalorder %s48, %s50
      %p57 = scmp.eq.s32.totalorder %s19, 1
      %p58 = por %p56, %p57
      %p59 = scmp.ne.s32.totalorder %s50, %s51
      %p60 = scmp.eq.s32.totalorder %s19, 0
      %p61 = por %p59, %p60
      %p62 = scmp.ne.s32.totalorder %s50, %s51
      %p63 = scmp.eq.s32.totalorder %s20, 1
      %p64 = por %p62, %p63
      %p66 = scmp.ne.s32.totalorder %s51, %s65
      %p67 = scmp.eq.s32.totalorder %s20, 0
      %p68 = por %p66, %p67
      %s70 = sadd.s32 %s69, 1
      %p73 = scmp.eq.s32.totalorder %s14, 1
      %p74 = scmp.ne.s32.totalorder %s69, %s71
      %p75 = scmp.eq.s32.totalorder %s14, 0
      %p76 = por %p74, %p75
      %p77 = scmp.ne.s32.totalorder %s69, %s71
      %p78 = scmp.eq.s32.totalorder %s19, 1
      %p79 = por %p77, %p78
      %p80 = scmp.ne.s32.totalorder %s71, %s72
      %p81 = scmp.eq.s32.totalorder %s19, 0
      %p82 = por %p80, %p81
      %p83 = scmp.ne.s32.totalorder %s71, %s72
      %p84 = scmp.eq.s32.totalorder %s20, 1
      %p85 = por %p83, %p84
      %p87 = scmp.ne.s32.totalorder %s72, %s86
      %p88 = scmp.eq.s32.totalorder %s20, 0
      %p89 = por %p87, %p88
      %s91 = sadd.s32 %s90, 1
      %p94 = scmp.eq.s32.totalorder %s14, 1
      %p95 = scmp.ne.s32.totalorder %s90, %s92
      %p96 = scmp.eq.s32.totalorder %s14, 0
      %p97 = por %p95, %p96
      %p98 = scmp.ne.s32.totalorder %s90, %s92
      %p99 = scmp.eq.s32.totalorder %s19, 1
      %p100 = por %p98, %p99
      %p101 = scmp.ne.s32.totalorder %s92, %s93
      %p102 = scmp.eq.s32.totalorder %s19, 0
      %p103 = por %p101, %p102
      %p104 = scmp.ne.s32.totalorder %s92, %s93
      %p105 = scmp.eq.s32.totalorder %s20, 1
      %p106 = por %p104, %p105
      %p108 = scmp.ne.s32.totalorder %s93, %s107
      %p109 = scmp.eq.s32.totalorder %s20, 0
      %p110 = por %p108, %p109
      %s112 = sadd.s32 %s111, 1
      %p115 = scmp.eq.s32.totalorder %s14, 1
      %p116 = scmp.ne.s32.totalorder %s111, %s113
      %p117 = scmp.eq.s32.totalorder %s14, 0
      %p118 = por %p116, %p117
      %p119 = scmp.ne.s32.totalorder %s111, %s113
      %p120 = scmp.eq.s32.totalorder %s19, 1
      %p121 = por %p119, %p120
      %p122 = scmp.ne.s32.totalorder %s113, %s114
      %p123 = scmp.eq.s32.totalorder %s19, 0
      %p124 = por %p122, %p123
      %p125 = scmp.ne.s32.totalorder %s113, %s114
      %p126 = scmp.eq.s32.totalorder %s20, 1
      %p127 = por %p125, %p126
      %p129 = scmp.ne.s32.totalorder %s114, %s128
      %p130 = scmp.eq.s32.totalorder %s20, 0
      %p131 = por %p129, %p130
      %s132 = ssub.s32 %s14, %s21
      %p133 = scmp.eq.s32.totalorder %s132, 0
      %s135 = sadd.s32 %s134, 1
      %s136 = scalar_select %p133, %s134, %s135
      %p139 = pneg %p133
      %p140 = scmp.eq.s32.totalorder %s14, 1
      %p141 = por %p139, %p140
      %p142 = scmp.ne.s32.totalorder %s134, %s137
      %p143 = scmp.eq.s32.totalorder %s14, 0
      %p144 = por %p142, %p143
      %p145 = scmp.ne.s32.totalorder %s134, %s137
      %p146 = scmp.eq.s32.totalorder %s19, 1
      %p147 = por %p145, %p146
      %p148 = scmp.ne.s32.totalorder %s137, %s138
      %p149 = scmp.eq.s32.totalorder %s19, 0
      %p150 = por %p148, %p149
      %p151 = scmp.ne.s32.totalorder %s137, %s138
      %p152 = scmp.eq.s32.totalorder %s20, 1
      %p153 = por %p151, %p152
      %p155 = scmp.ne.s32.totalorder %s138, %s154
      %p156 = scmp.eq.s32.totalorder %s20, 0
      %p157 = por %p155, %p156
      %p158 = scmp.le.s32.totalorder 1, %s14
      %p159 = scmp.lt.s32.totalorder %s14, 3
      %p160 = pnand %p158, %p159
      %p161 = pneg %p160
      // Predicated region
      $region9: #{tpu_custom_call.1} parent=5 // pred_check
        _
      $region10: #{tpu_custom_call.1} parent=5 // pred_check_branch
        %163 = sbr.rel (%p160) target = $region12
      $region11: #{tpu_custom_call.1} parent=5 // pred_region
        %s164 = ssub.s32 %s14, 1
        // Predicated region
        $region13: #{tpu_custom_call.1} parent=11 // pred_check
          %p165 = pneg %p61
        $region14: #{tpu_custom_call.1} parent=11 // pred_check_branch
          %167 = sbr.rel (%p165) target = $region16
        $region15: #{tpu_custom_call.1} parent=11 // pred_region
          _
        $region16: #{tpu_custom_call.1} parent=11 // pred_fallthru
          _
        // Predicated region
        $region17: #{tpu_custom_call.1} parent=11 // pred_check
          %p168 = pneg %p82
        $region18: #{tpu_custom_call.1} parent=11 // pred_check_branch
          %170 = sbr.rel (%p168) target = $region20
        $region19: #{tpu_custom_call.1} parent=11 // pred_region
          _
        $region20: #{tpu_custom_call.1} parent=11 // pred_fallthru
          _
        // Predicated region
        $region21: #{tpu_custom_call.1} parent=11 // pred_check
          %p171 = pneg %p103
        $region22: #{tpu_custom_call.1} parent=11 // pred_check_branch
          %173 = sbr.rel (%p171) target = $region24
        $region23: #{tpu_custom_call.1} parent=11 // pred_region
          _
        $region24: #{tpu_custom_call.1} parent=11 // pred_fallthru
          _
        // Predicated region
        $region25: #{tpu_custom_call.1} parent=11 // pred_check
          %p174 = pneg %p124
        $region26: #{tpu_custom_call.1} parent=11 // pred_check_branch
          %176 = sbr.rel (%p174) target = $region28
        $region27: #{tpu_custom_call.1} parent=11 // pred_region
          _
        $region28: #{tpu_custom_call.1} parent=11 // pred_fallthru
          _
      $region12: #{tpu_custom_call.1} parent=5 // pred_fallthru
        _
      %p177 = scmp.lt.s32.totalorder %s14, 2
      // Predicated region
      $region29: #{tpu_custom_call.1} parent=5 // pred_check
        %p178 = pneg %p177
      $region30: #{tpu_custom_call.1} parent=5 // pred_check_branch
        %180 = sbr.rel (%p178) target = $region32
      $region31: #{tpu_custom_call.1} parent=5 // pred_region
        // Predicated region
        $region33: #{tpu_custom_call.1} parent=31 // pred_check
          %p181 = pneg %p34
        $region34: #{tpu_custom_call.1} parent=31 // pred_check_branch
          %183 = sbr.rel (%p181) target = $region36
        $region35: #{tpu_custom_call.1} parent=31 // pred_region
          %p184 = scmp.lt.s32.totalorder %s14, 1
          %s185 = scalar_select %p184, %s14, 1
          %s186 = smul.addr %s185, 64
          %s187 = smul.addr %s186, 4
          %s188 = scalar_lea.vmem %s0, %s187
        $region36: #{tpu_custom_call.1} parent=31 // pred_fallthru
          _
      $region32: #{tpu_custom_call.1} parent=5 // pred_fallthru
        _
      %p189 = scmp.le.s32.totalorder 1, %s14
      %p190 = scmp.lt.s32.totalorder %s14, 3
      %p191 = pnand %p189, %p190
      %p192 = pneg %p191
      // Predicated region
      $region37: #{tpu_custom_call.1} parent=5 // pred_check
        _
      $region38: #{tpu_custom_call.1} parent=5 // pred_check_branch
        %194 = sbr.rel (%p191) target = $region40
      $region39: #{tpu_custom_call.1} parent=5 // pred_region
        %s195 = ssub.s32 %s14, 1
        %p196 = scmp.lt.s32.totalorder %s19, 1
        %s197 = scalar_select %p196, %s19, 1
        %s198 = smul.addr %s197, 64
        %s199 = smul.addr %s198, 4
        %s200 = scalar_lea.vmem %s0, %s199
        %p201 = pneg %p40
        %p202 = pneg %p37
        %p203 = pneg %p61
        %p204 = pneg %p58
        %p205 = pneg %p82
        %p206 = pneg %p79
        %p207 = pneg %p103
        %p208 = pneg %p100
        %p209 = pneg %p124
        %p210 = pneg %p121
        %p211 = pneg %p150
        %p212 = pneg %p147
        %s213 = sand.u32 %s137, 1
        %s214 = scalar_lea.sflag [#allocation4], %s213
        %s215 = sand.u32 %s137, 1
        %s216 = smul.addr %s215, 2
        %s217 = scalar_lea.vmem [#allocation3], %s216
        %p218 = scmp.lt.s32.totalorder %s19, 1
        %s219 = scalar_select %p218, %s19, 1
        %s220 = smul.addr %s219, 64
        %s221 = smul.addr %s220, 4
        %s222 = scalar_lea.vmem %s0, %s221
        %v224 = vld [vmem:[%s222] sm:$0xf]
        %v225 = vld [vmem:[%s222 + $0x4] sm:$0xf]
        %v226 = vld [vmem:[%s222 + $0x8] sm:$0xf]
        %v227 = vld [vmem:[%s222 + $0xc] sm:$0xf]
        %v228 = vld [vmem:[%s222 + $0x10] sm:$0xf]
        %v229 = vld [vmem:[%s222 + $0x14] sm:$0xf]
        %v230 = vld [vmem:[%s222 + $0x18] sm:$0xf]
        %v231 = vld [vmem:[%s222 + $0x1c] sm:$0xf]
        %v232 = vld [vmem:[%s222 + $0x20] sm:$0xf]
        %v233 = vld [vmem:[%s222 + $0x24] sm:$0xf]
        %v234 = vld [vmem:[%s222 + $0x28] sm:$0xf]
        %v235 = vld [vmem:[%s222 + $0x2c] sm:$0xf]
        %v236 = vld [vmem:[%s222 + $0x30] sm:$0xf]
        %v237 = vld [vmem:[%s222 + $0x34] sm:$0xf]
        %v238 = vld [vmem:[%s222 + $0x38] sm:$0xf]
        %v239 = vld [vmem:[%s222 + $0x3c] sm:$0xf]
        %v240 = vld [vmem:[%s222 + $0x40] sm:$0xf]
        %v241 = vld [vmem:[%s222 + $0x44] sm:$0xf]
        %v242 = vld [vmem:[%s222 + $0x48] sm:$0xf]
        %v243 = vld [vmem:[%s222 + $0x4c] sm:$0xf]
        %v244 = vld [vmem:[%s222 + $0x50] sm:$0xf]
        %v245 = vld [vmem:[%s222 + $0x54] sm:$0xf]
        %v246 = vld [vmem:[%s222 + $0x58] sm:$0xf]
        %v247 = vld [vmem:[%s222 + $0x5c] sm:$0xf]
        %v248 = vld [vmem:[%s222 + $0x60] sm:$0xf]
        %v249 = vld [vmem:[%s222 + $0x64] sm:$0xf]
        %v250 = vld [vmem:[%s222 + $0x68] sm:$0xf]
        %v251 = vld [vmem:[%s222 + $0x6c] sm:$0xf]
        %v252 = vld [vmem:[%s222 + $0x70] sm:$0xf]
        %v253 = vld [vmem:[%s222 + $0x74] sm:$0xf]
        %v254 = vld [vmem:[%s222 + $0x78] sm:$0xf]
        %v255 = vld [vmem:[%s222 + $0x7c] sm:$0xf]
        %v256 = vld [vmem:[%s222 + $0x80] sm:$0xf]
        %v257 = vld [vmem:[%s222 + $0x84] sm:$0xf]
        %v258 = vld [vmem:[%s222 + $0x88] sm:$0xf]
        %v259 = vld [vmem:[%s222 + $0x8c] sm:$0xf]
        %v260 = vld [vmem:[%s222 + $0x90] sm:$0xf]
        %v261 = vld [vmem:[%s222 + $0x94] sm:$0xf]
        %v262 = vld [vmem:[%s222 + $0x98] sm:$0xf]
        %v263 = vld [vmem:[%s222 + $0x9c] sm:$0xf]
        %v264 = vld [vmem:[%s222 + $0xa0] sm:$0xf]
        %v265 = vld [vmem:[%s222 + $0xa4] sm:$0xf]
        %v266 = vld [vmem:[%s222 + $0xa8] sm:$0xf]
        %v267 = vld [vmem:[%s222 + $0xac] sm:$0xf]
        %v268 = vld [vmem:[%s222 + $0xb0] sm:$0xf]
        %v269 = vld [vmem:[%s222 + $0xb4] sm:$0xf]
        %v270 = vld [vmem:[%s222 + $0xb8] sm:$0xf]
        %v271 = vld [vmem:[%s222 + $0xbc] sm:$0xf]
        %v272 = vld [vmem:[%s222 + $0xc0] sm:$0xf]
        %v273 = vld [vmem:[%s222 + $0xc4] sm:$0xf]
        %v274 = vld [vmem:[%s222 + $0xc8] sm:$0xf]
        %v275 = vld [vmem:[%s222 + $0xcc] sm:$0xf]
        %v276 = vld [vmem:[%s222 + $0xd0] sm:$0xf]
        %v277 = vld [vmem:[%s222 + $0xd4] sm:$0xf]
        %v278 = vld [vmem:[%s222 + $0xd8] sm:$0xf]
        %v279 = vld [vmem:[%s222 + $0xdc] sm:$0xf]
        %v280 = vld [vmem:[%s222 + $0xe0] sm:$0xf]
        %v281 = vld [vmem:[%s222 + $0xe4] sm:$0xf]
        %v282 = vld [vmem:[%s222 + $0xe8] sm:$0xf]
        %v283 = vld [vmem:[%s222 + $0xec] sm:$0xf]
        %v284 = vld [vmem:[%s222 + $0xf0] sm:$0xf]
        %v285 = vld [vmem:[%s222 + $0xf4] sm:$0xf]
        %v286 = vld [vmem:[%s222 + $0xf8] sm:$0xf]
        %v287 = vld [vmem:[%s222 + $0xfc] sm:$0xf]
        %v288 = vld [vmem:[%s1] sm:$0xf]
        %v289 = vld [vmem:[%s1 + $0x4] sm:$0xf]
        %v290 = vld [vmem:[%s1 + $0x8] sm:$0xf]
        %v291 = vld [vmem:[%s1 + $0xc] sm:$0xf]
        %v292 = vld [vmem:[%s1 + $0x10] sm:$0x3]
        %v293 = vld [vmem:[%s2] sm:$0x1]
        %v295 = vlaneseq
        %v296 = vshrl.u32 %v295, 7
        %v297 = vsub.s32 0, %v296
        %v298 = vrot.slane %v293, %v297
        %v364 = vunpack.c.l.b16 %v224
        %v365 = vunpack.c.l.b16 %v225
        %v366 = vunpack.c.l.b16 %v226
        %v367 = vunpack.c.l.b16 %v227
        %v368 = vunpack.c.l.b16 %v228
        %v369 = vunpack.c.l.b16 %v229
        %v370 = vunpack.c.l.b16 %v230
        %v371 = vunpack.c.l.b16 %v231
        %v372 = vunpack.c.l.b16 %v232
        %v373 = vunpack.c.l.b16 %v233
        %v374 = vunpack.c.l.b16 %v234
        %v375 = vunpack.c.l.b16 %v235
        %v376 = vunpack.c.l.b16 %v236
        %v377 = vunpack.c.l.b16 %v237
        %v378 = vunpack.c.l.b16 %v238
        %v379 = vunpack.c.l.b16 %v239
        %v380 = vunpack.c.l.b16 %v240
        %v381 = vunpack.c.l.b16 %v241
        %v382 = vunpack.c.l.b16 %v242
        %v383 = vunpack.c.l.b16 %v243
        %v384 = vunpack.c.l.b16 %v244
        %v385 = vunpack.c.l.b16 %v245
        %v386 = vunpack.c.l.b16 %v246
        %v387 = vunpack.c.l.b16 %v247
        %v388 = vunpack.c.l.b16 %v248
        %v389 = vunpack.c.l.b16 %v249
        %v390 = vunpack.c.l.b16 %v250
        %v391 = vunpack.c.l.b16 %v251
        %v392 = vunpack.c.l.b16 %v252
        %v393 = vunpack.c.l.b16 %v253
        %v394 = vunpack.c.l.b16 %v254
        %v395 = vunpack.c.l.b16 %v255
        %v396 = vunpack.c.l.b16 %v256
        %v397 = vunpack.c.l.b16 %v257
        %v398 = vunpack.c.l.b16 %v258
        %v399 = vunpack.c.l.b16 %v259
        %v400 = vunpack.c.l.b16 %v260
        %v401 = vunpack.c.l.b16 %v261
        %v402 = vunpack.c.l.b16 %v262
        %v403 = vunpack.c.l.b16 %v263
        %v404 = vunpack.c.l.b16 %v264
        %v405 = vunpack.c.l.b16 %v265
        %v406 = vunpack.c.l.b16 %v266
        %v407 = vunpack.c.l.b16 %v267
        %v408 = vunpack.c.l.b16 %v268
        %v409 = vunpack.c.l.b16 %v269
        %v410 = vunpack.c.l.b16 %v270
        %v411 = vunpack.c.l.b16 %v271
        %v412 = vunpack.c.l.b16 %v272
        %v413 = vunpack.c.l.b16 %v273
        %v414 = vunpack.c.l.b16 %v274
        %v415 = vunpack.c.l.b16 %v275
        %v416 = vunpack.c.l.b16 %v276
        %v417 = vunpack.c.l.b16 %v277
        %v418 = vunpack.c.l.b16 %v278
        %v419 = vunpack.c.l.b16 %v279
        %v420 = vunpack.c.l.b16 %v280
        %v421 = vunpack.c.l.b16 %v281
        %v422 = vunpack.c.l.b16 %v282
        %v423 = vunpack.c.l.b16 %v283
        %v424 = vunpack.c.l.b16 %v284
        %v425 = vunpack.c.l.b16 %v285
        %v426 = vunpack.c.l.b16 %v286
        %v427 = vunpack.c.l.b16 %v287
        %v428 = vpack.c.b16 %v365, %v364
        %v429 = vpack.c.b16 %v367, %v366
        %v430 = vpack.c.b16 %v369, %v368
        %v431 = vpack.c.b16 %v371, %v370
        %v432 = vpack.c.b16 %v373, %v372
        %v433 = vpack.c.b16 %v375, %v374
        %v434 = vpack.c.b16 %v377, %v376
        %v435 = vpack.c.b16 %v379, %v378
        %v436 = vpack.c.b16 %v381, %v380
        %v437 = vpack.c.b16 %v383, %v382
        %v438 = vpack.c.b16 %v385, %v384
        %v439 = vpack.c.b16 %v387, %v386
        %v440 = vpack.c.b16 %v389, %v388
        %v441 = vpack.c.b16 %v391, %v390
        %v442 = vpack.c.b16 %v393, %v392
        %v443 = vpack.c.b16 %v395, %v394
        %v444 = vpack.c.b16 %v397, %v396
        %v445 = vpack.c.b16 %v399, %v398
        %v446 = vpack.c.b16 %v401, %v400
        %v447 = vpack.c.b16 %v403, %v402
        %v448 = vpack.c.b16 %v405, %v404
        %v449 = vpack.c.b16 %v407, %v406
        %v450 = vpack.c.b16 %v409, %v408
        %v451 = vpack.c.b16 %v411, %v410
        %v452 = vpack.c.b16 %v413, %v412
        %v453 = vpack.c.b16 %v415, %v414
        %v454 = vpack.c.b16 %v417, %v416
        %v455 = vpack.c.b16 %v419, %v418
        %v456 = vpack.c.b16 %v421, %v420
        %v457 = vpack.c.b16 %v423, %v422
        %v458 = vpack.c.b16 %v425, %v424
        %v459 = vpack.c.b16 %v427, %v426
        %v465 = vunpack.c.l.b16 %v288
        %v466 = vunpack.c.l.b16 %v289
        %v467 = vunpack.c.l.b16 %v290
        %v468 = vunpack.c.l.b16 %v291
        %v469 = vunpack.c.l.b16 %v292
        %v470 = vpack.c.b16 %v466, %v465
        %v471 = vpack.c.b16 %v468, %v467
        %v472 = vpack.c.b16 %v469, %v469
        %vm475 = vcmask 293888
        %v477 = vsel %vm475, %v428, 0
        %v480 = vsel %vm475, %v429, 0
        %v483 = vsel %vm475, %v430, 0
        %v486 = vsel %vm475, %v431, 0
        %v489 = vsel %vm475, %v432, 0
        %v492 = vsel %vm475, %v433, 0
        %v495 = vsel %vm475, %v434, 0
        %v498 = vsel %vm475, %v435, 0
        %v501 = vsel %vm475, %v436, 0
        %v504 = vsel %vm475, %v437, 0
        %v507 = vsel %vm475, %v438, 0
        %v510 = vsel %vm475, %v439, 0
        %v513 = vsel %vm475, %v440, 0
        %v516 = vsel %vm475, %v441, 0
        %v519 = vsel %vm475, %v442, 0
        %v522 = vsel %vm475, %v443, 0
        %v525 = vsel %vm475, %v444, 0
        %v528 = vsel %vm475, %v445, 0
        %v531 = vsel %vm475, %v446, 0
        %v534 = vsel %vm475, %v447, 0
        %v537 = vsel %vm475, %v448, 0
        %v540 = vsel %vm475, %v449, 0
        %v543 = vsel %vm475, %v450, 0
        %v546 = vsel %vm475, %v451, 0
        %v549 = vsel %vm475, %v452, 0
        %v552 = vsel %vm475, %v453, 0
        %v555 = vsel %vm475, %v454, 0
        %v558 = vsel %vm475, %v455, 0
        %v561 = vsel %vm475, %v456, 0
        %v564 = vsel %vm475, %v457, 0
        %v567 = vsel %vm475, %v458, 0
        %v570 = vsel %vm475, %v459, 0
        %vm572 = vcmask 1041408
        %v574 = vsel %vm572, %v472, 0
        %576 = vmatprep.subr.bf16.mxu0 0
        %577 = vmatpush1.bf16.msra.mxu0 %v470
        %578 = vmatprep.subr.bf16.mxu0 0
        %579 = vmatpush1.bf16.msra.mxu0 %v471
        %580 = vmatprep.subr.bf16.mxu0 0
        %581 = vmatpush1.bf16.msra.mxu0 %v574
        %582 = vmatprep.subr.bf16.mxu0 0
        %583 = vmatpush1.bf16.msra.mxu0 0
        %584 = vmatprep.subr.bf16.mxu0 0
        %585 = vmatpush1.bf16.msra.mxu0 0
        %586 = vmatprep.subr.bf16.mxu0 0
        %587 = vmatpush1.bf16.msra.mxu0 0
        %588 = vmatprep.subr.bf16.mxu0 0
        %589 = vmatpush1.bf16.msra.mxu0 0
        %590 = vmatprep.subr.bf16.mxu0 0
        %591 = vmatpush1.bf16.msra.mxu0 0
        %592 = vmatprep.subr.bf16.mxu0 0
        %593 = vmatpush1.bf16.msra.mxu0 0
        %594 = vmatprep.subr.bf16.mxu0 0
        %595 = vmatpush1.bf16.msra.mxu0 0
        %596 = vmatprep.subr.bf16.mxu0 0
        %597 = vmatpush1.bf16.msra.mxu0 0
        %598 = vmatprep.subr.bf16.mxu0 0
        %599 = vmatpush1.bf16.msra.mxu0 0
        %600 = vmatprep.subr.bf16.mxu0 0
        %601 = vmatpush1.bf16.msra.mxu0 0
        %602 = vmatprep.subr.bf16.mxu0 0
        %603 = vmatpush1.bf16.msra.mxu0 0
        %604 = vmatprep.subr.bf16.mxu0 0
        %605 = vmatpush1.bf16.msra.mxu0 0
        %606 = vmatprep.subr.bf16.mxu0 0
        %607 = vmatpush1.bf16.msra.mxu0 0
        %608 = vmatprep.mubr.bf16.mxu0 0
        %609 = vmatmul.mubr.bf16.gmra.mrb[0].mxu0 %v477
        %v610 = vpop.f32.mrb[0].mxu0
        %v611 = vadd.f32 %v298, %v610
        %v612 = vpop.f32.mrb[0].mxu0
        %v613 = vpop.f32.mrb[0].mxu0
        %v614 = vadd.f32 %v298, %v613
        %v615 = vpop.f32.mrb[0].mxu0
        %616 = vmatprep.mubr.bf16.mxu0 0
        %617 = vmatmul.mubr.bf16.gmra.mrb[0].mxu0 %v480
        %v618 = vpop.f32.mrb[0].mxu0
        %v619 = vadd.f32 %v298, %v618
        %v620 = vpop.f32.mrb[0].mxu0
        %v621 = vpop.f32.mrb[0].mxu0
        %v622 = vadd.f32 %v298, %v621
        %v623 = vpop.f32.mrb[0].mxu0
        %624 = vmatprep.mubr.bf16.mxu0 0
        %625 = vmatmul.mubr.bf16.gmra.mrb[0].mxu0 %v483
        %v626 = vpop.f32.mrb[0].mxu0
        %v627 = vadd.f32 %v298, %v626
        %v628 = vpop.f32.mrb[0].mxu0
        %v629 = vpop.f32.mrb[0].mxu0
        %v630 = vadd.f32 %v298, %v629
        %v631 = vpop.f32.mrb[0].mxu0
        %632 = vmatprep.mubr.bf16.mxu0 0
        %633 = vmatmul.mubr.bf16.gmra.mrb[0].mxu0 %v486
        %v634 = vpop.f32.mrb[0].mxu0
        %v635 = vadd.f32 %v298, %v634
        %v636 = vpop.f32.mrb[0].mxu0
        %v637 = vpop.f32.mrb[0].mxu0
        %v638 = vadd.f32 %v298, %v637
        %v639 = vpop.f32.mrb[0].mxu0
        %640 = vmatprep.mubr.bf16.mxu0 0
        %641 = vmatmul.mubr.bf16.gmra.mrb[0].mxu0 %v489
        %v642 = vpop.f32.mrb[0].mxu0
        %v643 = vadd.f32 %v298, %v642
        %v644 = vpop.f32.mrb[0].mxu0
        %v645 = vpop.f32.mrb[0].mxu0
        %v646 = vadd.f32 %v298, %v645
        %v647 = vpop.f32.mrb[0].mxu0
        %648 = vmatprep.mubr.bf16.mxu0 0
        %649 = vmatmul.mubr.bf16.gmra.mrb[0].mxu0 %v492
        %v650 = vpop.f32.mrb[0].mxu0
        %v651 = vadd.f32 %v298, %v650
        %v652 = vpop.f32.mrb[0].mxu0
        %v653 = vpop.f32.mrb[0].mxu0
        %v654 = vadd.f32 %v298, %v653
        %v655 = vpop.f32.mrb[0].mxu0
        %656 = vmatprep.mubr.bf16.mxu0 0
        %657 = vmatmul.mubr.bf16.gmra.mrb[0].mxu0 %v495
        %v658 = vpop.f32.mrb[0].mxu0
        %v659 = vadd.f32 %v298, %v658
        %v660 = vpop.f32.mrb[0].mxu0
        %v661 = vpop.f32.mrb[0].mxu0
        %v662 = vadd.f32 %v298, %v661
        %v663 = vpop.f32.mrb[0].mxu0
        %664 = vmatprep.mubr.bf16.mxu0 0
        %665 = vmatmul.mubr.bf16.gmra.mrb[0].mxu0 %v498
        %v666 = vpop.f32.mrb[0].mxu0
        %v667 = vadd.f32 %v298, %v666
        %v668 = vpop.f32.mrb[0].mxu0
        %v669 = vpop.f32.mrb[0].mxu0
        %v670 = vadd.f32 %v298, %v669
        %v671 = vpop.f32.mrb[0].mxu0
        %672 = vmatprep.mubr.bf16.mxu0 0
        %673 = vmatmul.mubr.bf16.gmra.mrb[0].mxu0 %v501
        %v674 = vpop.f32.mrb[0].mxu0
        %v675 = vadd.f32 %v298, %v674
        %v676 = vpop.f32.mrb[0].mxu0
        %v677 = vpop.f32.mrb[0].mxu0
        %v678 = vadd.f32 %v298, %v677
        %v679 = vpop.f32.mrb[0].mxu0
        %680 = vmatprep.mubr.bf16.mxu0 0
        %681 = vmatmul.mubr.bf16.gmra.mrb[0].mxu0 %v504
        %v682 = vpop.f32.mrb[0].mxu0
        %v683 = vadd.f32 %v298, %v682
        %v684 = vpop.f32.mrb[0].mxu0
        %v685 = vpop.f32.mrb[0].mxu0
        %v686 = vadd.f32 %v298, %v685
        %v687 = vpop.f32.mrb[0].mxu0
        %688 = vmatprep.mubr.bf16.mxu0 0
        %689 = vmatmul.mubr.bf16.gmra.mrb[0].mxu0 %v507
        %v690 = vpop.f32.mrb[0].mxu0
        %v691 = vadd.f32 %v298, %v690
        %v692 = vpop.f32.mrb[0].mxu0
        %v693 = vpop.f32.mrb[0].mxu0
        %v694 = vadd.f32 %v298, %v693
        %v695 = vpop.f32.mrb[0].mxu0
        %696 = vmatprep.mubr.bf16.mxu0 0
        %697 = vmatmul.mubr.bf16.gmra.mrb[0].mxu0 %v510
        %v698 = vpop.f32.mrb[0].mxu0
        %v699 = vadd.f32 %v298, %v698
        %v700 = vpop.f32.mrb[0].mxu0
        %v701 = vpop.f32.mrb[0].mxu0
        %v702 = vadd.f32 %v298, %v701
        %v703 = vpop.f32.mrb[0].mxu0
        %704 = vmatprep.mubr.bf16.mxu0 0
        %705 = vmatmul.mubr.bf16.gmra.mrb[0].mxu0 %v513
        %v706 = vpop.f32.mrb[0].mxu0
        %v707 = vadd.f32 %v298, %v706
        %v708 = vpop.f32.mrb[0].mxu0
        %v709 = vpop.f32.mrb[0].mxu0
        %v710 = vadd.f32 %v298, %v709
        %v711 = vpop.f32.mrb[0].mxu0
        %712 = vmatprep.mubr.bf16.mxu0 0
        %713 = vmatmul.mubr.bf16.gmra.mrb[0].mxu0 %v516
        %v714 = vpop.f32.mrb[0].mxu0
        %v715 = vadd.f32 %v298, %v714
        %v716 = vpop.f32.mrb[0].mxu0
        %v717 = vpop.f32.mrb[0].mxu0
        %v718 = vadd.f32 %v298, %v717
        %v719 = vpop.f32.mrb[0].mxu0
        %720 = vmatprep.mubr.bf16.mxu0 0
        %721 = vmatmul.mubr.bf16.gmra.mrb[0].mxu0 %v519
        %v722 = vpop.f32.mrb[0].mxu0
        %v723 = vadd.f32 %v298, %v722
        %v724 = vpop.f32.mrb[0].mxu0
        %v725 = vpop.f32.mrb[0].mxu0
        %v726 = vadd.f32 %v298, %v725
        %v727 = vpop.f32.mrb[0].mxu0
        %728 = vmatprep.mubr.bf16.mxu0 0
        %729 = vmatmul.mubr.bf16.gmra.mrb[0].mxu0 %v522
        %v730 = vpop.f32.mrb[0].mxu0
        %v731 = vadd.f32 %v298, %v730
        %v732 = vpop.f32.mrb[0].mxu0
        %v733 = vpop.f32.mrb[0].mxu0
        %v734 = vadd.f32 %v298, %v733
        %v735 = vpop.f32.mrb[0].mxu0
        %736 = vmatprep.mubr.bf16.mxu0 0
        %737 = vmatmul.mubr.bf16.gmra.mrb[0].mxu0 %v525
        %v738 = vpop.f32.mrb[0].mxu0
        %v739 = vadd.f32 %v298, %v738
        %v740 = vpop.f32.mrb[0].mxu0
        %v741 = vpop.f32.mrb[0].mxu0
        %v742 = vadd.f32 %v298, %v741
        %v743 = vpop.f32.mrb[0].mxu0
        %744 = vmatprep.mubr.bf16.mxu0 0
        %745 = vmatmul.mubr.bf16.gmra.mrb[0].mxu0 %v528
        %v746 = vpop.f32.mrb[0].mxu0
        %v747 = vadd.f32 %v298, %v746
        %v748 = vpop.f32.mrb[0].mxu0
        %v749 = vpop.f32.mrb[0].mxu0
        %v750 = vadd.f32 %v298, %v749
        %v751 = vpop.f32.mrb[0].mxu0
        %752 = vmatprep.mubr.bf16.mxu0 0
        %753 = vmatmul.mubr.bf16.gmra.mrb[0].mxu0 %v531
        %v754 = vpop.f32.mrb[0].mxu0
        %v755 = vadd.f32 %v298, %v754
        %v756 = vpop.f32.mrb[0].mxu0
        %v757 = vpop.f32.mrb[0].mxu0
        %v758 = vadd.f32 %v298, %v757
        %v759 = vpop.f32.mrb[0].mxu0
        %760 = vmatprep.mubr.bf16.mxu0 0
        %761 = vmatmul.mubr.bf16.gmra.mrb[0].mxu0 %v534
        %v762 = vpop.f32.mrb[0].mxu0
        %v763 = vadd.f32 %v298, %v762
        %v764 = vpop.f32.mrb[0].mxu0
        %v765 = vpop.f32.mrb[0].mxu0
        %v766 = vadd.f32 %v298, %v765
        %v767 = vpop.f32.mrb[0].mxu0
        %768 = vmatprep.mubr.bf16.mxu0 0
        %769 = vmatmul.mubr.bf16.gmra.mrb[0].mxu0 %v537
        %v770 = vpop.f32.mrb[0].mxu0
        %v771 = vadd.f32 %v298, %v770
        %v772 = vpop.f32.mrb[0].mxu0
        %v773 = vpop.f32.mrb[0].mxu0
        %v774 = vadd.f32 %v298, %v773
        %v775 = vpop.f32.mrb[0].mxu0
        %776 = vmatprep.mubr.bf16.mxu0 0
        %777 = vmatmul.mubr.bf16.gmra.mrb[0].mxu0 %v540
        %v778 = vpop.f32.mrb[0].mxu0
        %v779 = vadd.f32 %v298, %v778
        %v780 = vpop.f32.mrb[0].mxu0
        %v781 = vpop.f32.mrb[0].mxu0
        %v782 = vadd.f32 %v298, %v781
        %v783 = vpop.f32.mrb[0].mxu0
        %784 = vmatprep.mubr.bf16.mxu0 0
        %785 = vmatmul.mubr.bf16.gmra.mrb[0].mxu0 %v543
        %v786 = vpop.f32.mrb[0].mxu0
        %v787 = vadd.f32 %v298, %v786
        %v788 = vpop.f32.mrb[0].mxu0
        %v789 = vpop.f32.mrb[0].mxu0
        %v790 = vadd.f32 %v298, %v789
        %v791 = vpop.f32.mrb[0].mxu0
        %792 = vmatprep.mubr.bf16.mxu0 0
        %793 = vmatmul.mubr.bf16.gmra.mrb[0].mxu0 %v546
        %v794 = vpop.f32.mrb[0].mxu0
        %v795 = vadd.f32 %v298, %v794
        %v796 = vpop.f32.mrb[0].mxu0
        %v797 = vpop.f32.mrb[0].mxu0
        %v798 = vadd.f32 %v298, %v797
        %v799 = vpop.f32.mrb[0].mxu0
        %800 = vmatprep.mubr.bf16.mxu0 0
        %801 = vmatmul.mubr.bf16.gmra.mrb[0].mxu0 %v549
        %v802 = vpop.f32.mrb[0].mxu0
        %v803 = vadd.f32 %v298, %v802
        %v804 = vpop.f32.mrb[0].mxu0
        %v805 = vpop.f32.mrb[0].mxu0
        %v806 = vadd.f32 %v298, %v805
        %v807 = vpop.f32.mrb[0].mxu0
        %808 = vmatprep.mubr.bf16.mxu0 0
        %809 = vmatmul.mubr.bf16.gmra.mrb[0].mxu0 %v552
        %v810 = vpop.f32.mrb[0].mxu0
        %v811 = vadd.f32 %v298, %v810
        %v812 = vpop.f32.mrb[0].mxu0
        %v813 = vpop.f32.mrb[0].mxu0
        %v814 = vadd.f32 %v298, %v813
        %v815 = vpop.f32.mrb[0].mxu0
        %816 = vmatprep.mubr.bf16.mxu0 0
        %817 = vmatmul.mubr.bf16.gmra.mrb[0].mxu0 %v555
        %v818 = vpop.f32.mrb[0].mxu0
        %v819 = vadd.f32 %v298, %v818
        %v820 = vpop.f32.mrb[0].mxu0
        %v821 = vpop.f32.mrb[0].mxu0
        %v822 = vadd.f32 %v298, %v821
        %v823 = vpop.f32.mrb[0].mxu0
        %824 = vmatprep.mubr.bf16.mxu0 0
        %825 = vmatmul.mubr.bf16.gmra.mrb[0].mxu0 %v558
        %v826 = vpop.f32.mrb[0].mxu0
        %v827 = vadd.f32 %v298, %v826
        %v828 = vpop.f32.mrb[0].mxu0
        %v829 = vpop.f32.mrb[0].mxu0
        %v830 = vadd.f32 %v298, %v829
        %v831 = vpop.f32.mrb[0].mxu0
        %832 = vmatprep.mubr.bf16.mxu0 0
        %833 = vmatmul.mubr.bf16.gmra.mrb[0].mxu0 %v561
        %v834 = vpop.f32.mrb[0].mxu0
        %v835 = vadd.f32 %v298, %v834
        %v836 = vpop.f32.mrb[0].mxu0
        %v837 = vpop.f32.mrb[0].mxu0
        %v838 = vadd.f32 %v298, %v837
        %v839 = vpop.f32.mrb[0].mxu0
        %840 = vmatprep.mubr.bf16.mxu0 0
        %841 = vmatmul.mubr.bf16.gmra.mrb[0].mxu0 %v564
        %v842 = vpop.f32.mrb[0].mxu0
        %v843 = vadd.f32 %v298, %v842
        %v844 = vpop.f32.mrb[0].mxu0
        %v845 = vpop.f32.mrb[0].mxu0
        %v846 = vadd.f32 %v298, %v845
        %v847 = vpop.f32.mrb[0].mxu0
        %848 = vmatprep.mubr.bf16.mxu0 0
        %849 = vmatmul.mubr.bf16.gmra.mrb[0].mxu0 %v567
        %v850 = vpop.f32.mrb[0].mxu0
        %v851 = vadd.f32 %v298, %v850
        %v852 = vpop.f32.mrb[0].mxu0
        %v853 = vpop.f32.mrb[0].mxu0
        %v854 = vadd.f32 %v298, %v853
        %v855 = vpop.f32.mrb[0].mxu0
        %856 = vmatprep.mubr.bf16.mxu0 0
        %857 = vmatmul.mubr.bf16.gmra.mrb[0].mxu0 %v570
        %v858 = vpop.f32.mrb[0].mxu0
        %v859 = vadd.f32 %v298, %v858
        %v860 = vpop.f32.mrb[0].mxu0
        %v861 = vpop.f32.mrb[0].mxu0
        %v862 = vadd.f32 %v298, %v861
        %v863 = vpop.f32.mrb[0].mxu0
        %864 = vdwg.mxu0
        %v865 = vmax.f32 %v611, 0.0
        %v866 = vmax.f32 %v614, 0.0
        %v867 = vmax.f32 %v619, 0.0
        %v868 = vmax.f32 %v622, 0.0
        %v869 = vmax.f32 %v627, 0.0
        %v870 = vmax.f32 %v630, 0.0
        %v871 = vmax.f32 %v635, 0.0
        %v872 = vmax.f32 %v638, 0.0
        %v873 = vmax.f32 %v643, 0.0
        %v874 = vmax.f32 %v646, 0.0
        %v875 = vmax.f32 %v651, 0.0
        %v876 = vmax.f32 %v654, 0.0
        %v877 = vmax.f32 %v659, 0.0
        %v878 = vmax.f32 %v662, 0.0
        %v879 = vmax.f32 %v667, 0.0
        %v880 = vmax.f32 %v670, 0.0
        %v881 = vmax.f32 %v675, 0.0
        %v882 = vmax.f32 %v678, 0.0
        %v883 = vmax.f32 %v683, 0.0
        %v884 = vmax.f32 %v686, 0.0
        %v885 = vmax.f32 %v691, 0.0
        %v886 = vmax.f32 %v694, 0.0
        %v887 = vmax.f32 %v699, 0.0
        %v888 = vmax.f32 %v702, 0.0
        %v889 = vmax.f32 %v707, 0.0
        %v890 = vmax.f32 %v710, 0.0
        %v891 = vmax.f32 %v715, 0.0
        %v892 = vmax.f32 %v718, 0.0
        %v893 = vmax.f32 %v723, 0.0
        %v894 = vmax.f32 %v726, 0.0
        %v895 = vmax.f32 %v731, 0.0
        %v896 = vmax.f32 %v734, 0.0
        %v897 = vmax.f32 %v739, 0.0
        %v898 = vmax.f32 %v742, 0.0
        %v899 = vmax.f32 %v747, 0.0
        %v900 = vmax.f32 %v750, 0.0
        %v901 = vmax.f32 %v755, 0.0
        %v902 = vmax.f32 %v758, 0.0
        %v903 = vmax.f32 %v763, 0.0
        %v904 = vmax.f32 %v766, 0.0
        %v905 = vmax.f32 %v771, 0.0
        %v906 = vmax.f32 %v774, 0.0
        %v907 = vmax.f32 %v779, 0.0
        %v908 = vmax.f32 %v782, 0.0
        %v909 = vmax.f32 %v787, 0.0
        %v910 = vmax.f32 %v790, 0.0
        %v911 = vmax.f32 %v795, 0.0
        %v912 = vmax.f32 %v798, 0.0
        %v913 = vmax.f32 %v803, 0.0
        %v914 = vmax.f32 %v806, 0.0
        %v915 = vmax.f32 %v811, 0.0
        %v916 = vmax.f32 %v814, 0.0
        %v917 = vmax.f32 %v819, 0.0
        %v918 = vmax.f32 %v822, 0.0
        %v919 = vmax.f32 %v827, 0.0
        %v920 = vmax.f32 %v830, 0.0
        %v921 = vmax.f32 %v835, 0.0
        %v922 = vmax.f32 %v838, 0.0
        %v923 = vmax.f32 %v843, 0.0
        %v924 = vmax.f32 %v846, 0.0
        %v925 = vmax.f32 %v851, 0.0
        %v926 = vmax.f32 %v854, 0.0
        %v927 = vmax.f32 %v859, 0.0
        %v928 = vmax.f32 %v862, 0.0
        %v929 = vadd.f32 %v865, %v866
        %v930 = vadd.f32 %v929, %v867
        %v931 = vadd.f32 %v930, %v868
        %v932 = vadd.f32 %v931, %v869
        %v933 = vadd.f32 %v932, %v870
        %v934 = vadd.f32 %v933, %v871
        %v935 = vadd.f32 %v934, %v872
        %v936 = vadd.f32 %v935, %v873
        %v937 = vadd.f32 %v936, %v874
        %v938 = vadd.f32 %v937, %v875
        %v939 = vadd.f32 %v938, %v876
        %v940 = vadd.f32 %v939, %v877
        %v941 = vadd.f32 %v940, %v878
        %v942 = vadd.f32 %v941, %v879
        %v943 = vadd.f32 %v942, %v880
        %v944 = vadd.f32 %v943, %v881
        %v945 = vadd.f32 %v944, %v882
        %v946 = vadd.f32 %v945, %v883
        %v947 = vadd.f32 %v946, %v884
        %v948 = vadd.f32 %v947, %v885
        %v949 = vadd.f32 %v948, %v886
        %v950 = vadd.f32 %v949, %v887
        %v951 = vadd.f32 %v950, %v888
        %v952 = vadd.f32 %v951, %v889
        %v953 = vadd.f32 %v952, %v890
        %v954 = vadd.f32 %v953, %v891
        %v955 = vadd.f32 %v954, %v892
        %v956 = vadd.f32 %v955, %v893
        %v957 = vadd.f32 %v956, %v894
        %v958 = vadd.f32 %v957, %v895
        %v959 = vadd.f32 %v958, %v896
        %v960 = vrot.slane %v959, 4
        %v961 = vadd.f32 %v959, %v960
        %v962 = vrot.slane %v961, 2
        %v963 = vadd.f32 %v961, %v962
        %v964 = vrot.slane %v963, 1
        %v965 = vadd.f32 %v963, %v964
        %966 = vst [vmem:[#allocation2] sm:$0x1] %v965
        %v967 = vadd.f32 %v897, %v898
        %v968 = vadd.f32 %v967, %v899
        %v969 = vadd.f32 %v968, %v900
        %v970 = vadd.f32 %v969, %v901
        %v971 = vadd.f32 %v970, %v902
        %v972 = vadd.f32 %v971, %v903
        %v973 = vadd.f32 %v972, %v904
        %v974 = vadd.f32 %v973, %v905
        %v975 = vadd.f32 %v974, %v906
        %v976 = vadd.f32 %v975, %v907
        %v977 = vadd.f32 %v976, %v908
        %v978 = vadd.f32 %v977, %v909
        %v979 = vadd.f32 %v978, %v910
        %v980 = vadd.f32 %v979, %v911
        %v981 = vadd.f32 %v980, %v912
        %v982 = vadd.f32 %v981, %v913
        %v983 = vadd.f32 %v982, %v914
        %v984 = vadd.f32 %v983, %v915
        %v985 = vadd.f32 %v984, %v916
        %v986 = vadd.f32 %v985, %v917
        %v987 = vadd.f32 %v986, %v918
        %v988 = vadd.f32 %v987, %v919
        %v989 = vadd.f32 %v988, %v920
        %v990 = vadd.f32 %v989, %v921
        %v991 = vadd.f32 %v990, %v922
        %v992 = vadd.f32 %v991, %v923
        %v993 = vadd.f32 %v992, %v924
        %v994 = vadd.f32 %v993, %v925
        %v995 = vadd.f32 %v994, %v926
        %v996 = vadd.f32 %v995, %v927
        %v997 = vadd.f32 %v996, %v928
        %v998 = vrot.slane %v997, 4
        %v999 = vadd.f32 %v997, %v998
        %v1000 = vrot.slane %v999, 2
        %v1001 = vadd.f32 %v999, %v1000
        %v1002 = vrot.slane %v1001, 1
        %v1003 = vadd.f32 %v1001, %v1002
        %1004 = vst [vmem:[#allocation2 + $0x1] sm:$0x1] %v1003
        %v1005 = vld [vmem:[#allocation2] sm:$0x3]
        %v1006 = vmul.f32 %v1005, 0.00390625
        %v1007 = vpack.c.bf16 %v1006, %v1006
        %v1008 = vld [vmem:[%s3] sm:$0xf]
        %v1009 = vld [vmem:[%s3 + $0x4] sm:$0xf]
        %v1010 = vld [vmem:[%s3 + $0x8] sm:$0xf]
        %v1011 = vld [vmem:[%s3 + $0xc] sm:$0xf]
        %v1012 = vld [vmem:[%s3 + $0x10] sm:$0xf]
        %v1013 = vld [vmem:[%s3 + $0x14] sm:$0xf]
        %v1014 = vld [vmem:[%s3 + $0x18] sm:$0xf]
        %v1015 = vld [vmem:[%s3 + $0x1c] sm:$0xf]
        %v1016 = vld [vmem:[%s3 + $0x20] sm:$0xf]
        %v1017 = vld [vmem:[%s3 + $0x24] sm:$0xf]
        %v1018 = vld [vmem:[%s3 + $0x28] sm:$0xf]
        %v1019 = vld [vmem:[%s3 + $0x2c] sm:$0xf]
        %v1020 = vld [vmem:[%s3 + $0x30] sm:$0xf]
        %v1021 = vld [vmem:[%s3 + $0x34] sm:$0xf]
        %v1022 = vld [vmem:[%s3 + $0x38] sm:$0xf]
        %v1023 = vld [vmem:[%s3 + $0x3c] sm:$0xf]
        %v1024 = vld [vmem:[%s4] sm:$0x1]
        %v1026 = vlaneseq
        %v1027 = vshrl.u32 %v1026, 7
        %v1028 = vsub.s32 0, %v1027
        %v1029 = vrot.slane %v1024, %v1028
        %v1047 = vunpack.c.l.b16 %v1008
        %v1048 = vunpack.c.l.b16 %v1009
        %v1049 = vunpack.c.l.b16 %v1010
        %v1050 = vunpack.c.l.b16 %v1011
        %v1051 = vunpack.c.l.b16 %v1012
        %v1052 = vunpack.c.l.b16 %v1013
        %v1053 = vunpack.c.l.b16 %v1014
        %v1054 = vunpack.c.l.b16 %v1015
        %v1055 = vunpack.c.l.b16 %v1016
        %v1056 = vunpack.c.l.b16 %v1017
        %v1057 = vunpack.c.l.b16 %v1018
        %v1058 = vunpack.c.l.b16 %v1019
        %v1059 = vunpack.c.l.b16 %v1020
        %v1060 = vunpack.c.l.b16 %v1021
        %v1061 = vunpack.c.l.b16 %v1022
        %v1062 = vunpack.c.l.b16 %v1023
        %v1063 = vpack.c.b16 %v1048, %v1047
        %v1064 = vpack.c.b16 %v1050, %v1049
        %v1065 = vpack.c.b16 %v1052, %v1051
        %v1066 = vpack.c.b16 %v1054, %v1053
        %v1067 = vpack.c.b16 %v1056, %v1055
        %v1068 = vpack.c.b16 %v1058, %v1057
        %v1069 = vpack.c.b16 %v1060, %v1059
        %v1070 = vpack.c.b16 %v1062, %v1061
        %1079 = vmatprep.subr.bf16.mxu0 0
        %1080 = vmatpush1.bf16.msra.mxu0 %v1063
        %1081 = vmatprep.subr.bf16.mxu0 0
        %1082 = vmatpush1.bf16.msra.mxu0 %v1064
        %1083 = vmatprep.subr.bf16.mxu0 0
        %1084 = vmatpush1.bf16.msra.mxu0 %v1065
        %1085 = vmatprep.subr.bf16.mxu0 0
        %1086 = vmatpush1.bf16.msra.mxu0 %v1066
        %1087 = vmatprep.subr.bf16.mxu0 0
        %1088 = vmatpush1.bf16.msra.mxu0 %v1067
        %1089 = vmatprep.subr.bf16.mxu0 0
        %1090 = vmatpush1.bf16.msra.mxu0 %v1068
        %1091 = vmatprep.subr.bf16.mxu0 0
        %1092 = vmatpush1.bf16.msra.mxu0 %v1069
        %1093 = vmatprep.subr.bf16.mxu0 0
        %1094 = vmatpush1.bf16.msra.mxu0 %v1070
        %1095 = vmatprep.subr.bf16.mxu0 0
        %1096 = vmatpush1.bf16.msra.mxu0 0
        %1097 = vmatprep.subr.bf16.mxu0 0
        %1098 = vmatpush1.bf16.msra.mxu0 0
        %1099 = vmatprep.subr.bf16.mxu0 0
        %1100 = vmatpush1.bf16.msra.mxu0 0
        %1101 = vmatprep.subr.bf16.mxu0 0
        %1102 = vmatpush1.bf16.msra.mxu0 0
        %1103 = vmatprep.subr.bf16.mxu0 0
        %1104 = vmatpush1.bf16.msra.mxu0 0
        %1105 = vmatprep.subr.bf16.mxu0 0
        %1106 = vmatpush1.bf16.msra.mxu0 0
        %1107 = vmatprep.subr.bf16.mxu0 0
        %1108 = vmatpush1.bf16.msra.mxu0 0
        %1109 = vmatprep.subr.bf16.mxu0 0
        %1110 = vmatpush1.bf16.msra.mxu0 0
        %1111 = vmatprep.mubr.bf16.mxu0 0
        %1112 = vmatmul.mubr.bf16.gmra.mrb[0].mxu0 %v1007
        %v1113 = vpop.f32.mrb[0].mxu0
        %v1114 = vadd.f32 %v1029, %v1113
        %v1115 = vpop.f32.mrb[0].mxu0
        %v1116 = vpop.f32.mrb[0].mxu0
        %v1117 = vpop.f32.mrb[0].mxu0
        %1118 = vdwg.mxu0
        %1119 = vst [vmem:[%s217] sm:$0x3] %v1114
        %s1120 = sand.u32 %s137, 1
        %s1121 = scalar_lea.sflag [#allocation4], %s1120
        %s1122 = sand.u32 %s137, 1
        %s1123 = smul.addr %s1122, 2
        %s1124 = scalar_lea.vmem [#allocation3], %s1123
        // Predicated region
        $region41: #{tpu_custom_call.1} parent=39 // pred_check
          %p1125 = pneg %p147
        $region42: #{tpu_custom_call.1} parent=39 // pred_check_branch
          %1127 = sbr.rel (%p1125) target = $region44
        $region43: #{tpu_custom_call.1} parent=39 // pred_region
          %s1129 = ssub.s32 32, 32
          %1130 = vsyncadd %s1121, %s1129
          %s1131 = smul.addr %s19, 32
          %s1132 = scalar_lea.hbm %s5, %s1131
          %s1134 = sshll.u32 %s1124, 4
          %s1135 = int_to_ptr.vmem [resolvable:$true] %s1134
          %1137 = dma.vmem_to_hbm [thread:$0]  %s1135, 32, %s1132, %s1121
        $region44: #{tpu_custom_call.1} parent=39 // pred_fallthru
          _
      $region40: #{tpu_custom_call.1} parent=5 // pred_fallthru
        _
      %p1138 = scmp.le.s32.totalorder 2, %s14
      // Predicated region
      $region45: #{tpu_custom_call.1} parent=5 // pred_check
        %p1139 = pneg %p1138
      $region46: #{tpu_custom_call.1} parent=5 // pred_check_branch
        %1141 = sbr.rel (%p1139) target = $region48
      $region47: #{tpu_custom_call.1} parent=5 // pred_region
        %s1142 = ssub.s32 %s14, 2
        // Predicated region
        $region49: #{tpu_custom_call.1} parent=47 // pred_check
          %p1143 = pneg %p153
        $region50: #{tpu_custom_call.1} parent=47 // pred_check_branch
          %1145 = sbr.rel (%p1143) target = $region52
        $region51: #{tpu_custom_call.1} parent=47 // pred_region
          %s1146 = sand.u32 %s138, 1
          %s1147 = scalar_lea.sflag [#allocation4], %s1146
          %s1148 = sand.u32 %s138, 1
          %s1149 = smul.addr %s1148, 2
          %s1150 = scalar_lea.vmem [#allocation3], %s1149
          %1151 = dma.done %s1147, 32
        $region52: #{tpu_custom_call.1} parent=47 // pred_fallthru
          _
      $region48: #{tpu_custom_call.1} parent=5 // pred_fallthru
        _
    $region6: #{tpu_custom_call.1} parent=1 // loop_footer
      %s18 = sadd.s32 1, %s14
    $region7: #{tpu_custom_call.1} parent=1 // loop_footer_branch
      %13 = sbr.rel target = $region3
    $region8: #{tpu_custom_call.1} parent=1 // loop_exit
      _
    %1152 = vsyncpa [#allocation4], 1
    %s1153 = scalar_lea.sflag [#allocation4], 1
    %1154 = vsyncpa %s1153, 1

// kernel: tpu_custom_call.1
$region0: #{tpu_custom_call.1}
  #allocation0 [shape = 'u32[]', space=smem, size = 0x4, offset = 0x4, fixed_abs, tag = 'smem constant byte address 0x4 - core index']
  #allocation1 [shape = 'u32[144,128]{1,0:T(1,128)}', space=vmem, size = 0x12000, scoped, tag = 'internal scratch']
  #allocation2 [shape = 'f32[2,128]{1,0:T(2,128)}', space=vmem, size = 0x400, scoped, tag = 'scratch operand']
  %s0 = inlined_call_operand.vmem [shape: bf16[2,512,36], index: 0, kind: input, shape index: {}]
  %s1 = inlined_call_operand.vmem [shape: bf16[36,128], index: 1, kind: input, shape index: {}]
  %s2 = inlined_call_operand.vmem [shape: f32[1,128], index: 2, kind: input, shape index: {}]
  %s3 = inlined_call_operand.vmem [shape: bf16[128,128], index: 3, kind: input, shape index: {}]
  %s4 = inlined_call_operand.vmem [shape: f32[1,128], index: 4, kind: input, shape index: {}]
  %s5 = inlined_call_operand.hbm [shape: f32[2,2,128], index: 5, kind: output, shape index: {}]
  %s6 = sld [smem:[#allocation0]]
  $region53: #{tpu_custom_call.1} parent=0
    _
  %s8 = ssub.s32 1, %s6
  %s9 = scalar_select 0, %s8, %s6
  $region1: #{tpu_custom_call.1} parent=0
    #allocation3 [shape = 'u8[2048]{0}', space=vmem, size = 0x800, scoped, tag = 'output window, operand 0']
    #allocation4 [shape = 's32[2]{0}', space=sflag, size = 0x8, scoped, tag = 'scoped memory for tpu_custom_call.1']
    %10 = vsyncpa [#allocation4], 0
    %s11 = scalar_lea.sflag [#allocation4], 1
    %12 = vsyncpa %s11, 0
    loop: start=0, step=1, limit=4
    $region2: #{tpu_custom_call.1} parent=1 // loop_pre_header
      _
    $region3: #{tpu_custom_call.1} parent=1 // loop_header
      %s14 = sphi 0, %s18
      %p15 = scmp.ge.s32.totalorder %s14, 4
      %s24 = sphi 0, %s26
      %s27 = sphi 0, %s24
      %s28 = sphi 0, %s27
      %s44 = sphi 0, %s28
      %s48 = sphi 0, %s48
      %s50 = sphi 0, %s48
      %s51 = sphi 0, %s50
      %s65 = sphi 0, %s51
      %s69 = sphi 0, %s69
      %s71 = sphi 0, %s69
      %s72 = sphi 0, %s71
      %s86 = sphi 0, %s72
      %s90 = sphi 0, %s90
      %s92 = sphi 0, %s90
      %s93 = sphi 0, %s92
      %s107 = sphi 0, %s93
      %s111 = sphi 0, %s111
      %s113 = sphi 0, %s111
      %s114 = sphi 0, %s113
      %s128 = sphi 0, %s114
      %s134 = sphi 0, %s136
      %s137 = sphi 0, %s134
      %s138 = sphi 0, %s137
      %s154 = sphi 0, %s138
    $region4: #{tpu_custom_call.1} parent=1 // loop_header_branch
      %17 = sbr.rel (%p15) target = $region8
    $region5: #{tpu_custom_call.1} parent=1 // loop_body
      %s19 = ssub.s32 %s14, 1
      %s20 = ssub.s32 %s14, 2
      %s21 = sadd.s32 %s14, 1
      %s22 = ssub.s32 %s14, %s21
      %p23 = scmp.eq.s32.totalorder %s22, 0
      %s25 = sadd.s32 %s24, 1
      %s26 = scalar_select %p23, %s24, %s25
      %p29 = pneg %p23
      %p30 = scmp.eq.s32.totalorder %s14, 1
      %p31 = por %p29, %p30
      %p32 = scmp.ne.s32.totalorder %s24, %s27
      %p33 = scmp.eq.s32.totalorder %s14, 0
      %p34 = por %p32, %p33
      %p35 = scmp.ne.s32.totalorder %s24, %s27
      %p36 = scmp.eq.s32.totalorder %s19, 1
      %p37 = por %p35, %p36
      %p38 = scmp.ne.s32.totalorder %s27, %s28
      %p39 = scmp.eq.s32.totalorder %s19, 0
      %p40 = por %p38, %p39
      %p41 = scmp.ne.s32.totalorder %s27, %s28
      %p42 = scmp.eq.s32.totalorder %s20, 1
      %p43 = por %p41, %p42
      %p45 = scmp.ne.s32.totalorder %s28, %s44
      %p46 = scmp.eq.s32.totalorder %s20, 0
      %p47 = por %p45, %p46
      %s49 = sadd.s32 %s48, 1
      %p52 = scmp.eq.s32.totalorder %s14, 1
      %p53 = scmp.ne.s32.totalorder %s48, %s50
      %p54 = scmp.eq.s32.totalorder %s14, 0
      %p55 = por %p53, %p54
      %p56 = scmp.ne.s32.totalorder %s48, %s50
      %p57 = scmp.eq.s32.totalorder %s19, 1
      %p58 = por %p56, %p57
      %p59 = scmp.ne.s32.totalorder %s50, %s51
      %p60 = scmp.eq.s32.totalorder %s19, 0
      %p61 = por %p59, %p60
      %p62 = scmp.ne.s32.totalorder %s50, %s51
      %p63 = scmp.eq.s32.totalorder %s20, 1
      %p64 = por %p62, %p63
      %p66 = scmp.ne.s32.totalorder %s51, %s65
      %p67 = scmp.eq.s32.totalorder %s20, 0
      %p68 = por %p66, %p67
      %s70 = sadd.s32 %s69, 1
      %p73 = scmp.eq.s32.totalorder %s14, 1
      %p74 = scmp.ne.s32.totalorder %s69, %s71
      %p75 = scmp.eq.s32.totalorder %s14, 0
      %p76 = por %p74, %p75
      %p77 = scmp.ne.s32.totalorder %s69, %s71
      %p78 = scmp.eq.s32.totalorder %s19, 1
      %p79 = por %p77, %p78
      %p80 = scmp.ne.s32.totalorder %s71, %s72
      %p81 = scmp.eq.s32.totalorder %s19, 0
      %p82 = por %p80, %p81
      %p83 = scmp.ne.s32.totalorder %s71, %s72
      %p84 = scmp.eq.s32.totalorder %s20, 1
      %p85 = por %p83, %p84
      %p87 = scmp.ne.s32.totalorder %s72, %s86
      %p88 = scmp.eq.s32.totalorder %s20, 0
      %p89 = por %p87, %p88
      %s91 = sadd.s32 %s90, 1
      %p94 = scmp.eq.s32.totalorder %s14, 1
      %p95 = scmp.ne.s32.totalorder %s90, %s92
      %p96 = scmp.eq.s32.totalorder %s14, 0
      %p97 = por %p95, %p96
      %p98 = scmp.ne.s32.totalorder %s90, %s92
      %p99 = scmp.eq.s32.totalorder %s19, 1
      %p100 = por %p98, %p99
      %p101 = scmp.ne.s32.totalorder %s92, %s93
      %p102 = scmp.eq.s32.totalorder %s19, 0
      %p103 = por %p101, %p102
      %p104 = scmp.ne.s32.totalorder %s92, %s93
      %p105 = scmp.eq.s32.totalorder %s20, 1
      %p106 = por %p104, %p105
      %p108 = scmp.ne.s32.totalorder %s93, %s107
      %p109 = scmp.eq.s32.totalorder %s20, 0
      %p110 = por %p108, %p109
      %s112 = sadd.s32 %s111, 1
      %p115 = scmp.eq.s32.totalorder %s14, 1
      %p116 = scmp.ne.s32.totalorder %s111, %s113
      %p117 = scmp.eq.s32.totalorder %s14, 0
      %p118 = por %p116, %p117
      %p119 = scmp.ne.s32.totalorder %s111, %s113
      %p120 = scmp.eq.s32.totalorder %s19, 1
      %p121 = por %p119, %p120
      %p122 = scmp.ne.s32.totalorder %s113, %s114
      %p123 = scmp.eq.s32.totalorder %s19, 0
      %p124 = por %p122, %p123
      %p125 = scmp.ne.s32.totalorder %s113, %s114
      %p126 = scmp.eq.s32.totalorder %s20, 1
      %p127 = por %p125, %p126
      %p129 = scmp.ne.s32.totalorder %s114, %s128
      %p130 = scmp.eq.s32.totalorder %s20, 0
      %p131 = por %p129, %p130
      %s132 = ssub.s32 %s14, %s21
      %p133 = scmp.eq.s32.totalorder %s132, 0
      %s135 = sadd.s32 %s134, 1
      %s136 = scalar_select %p133, %s134, %s135
      %p139 = pneg %p133
      %p140 = scmp.eq.s32.totalorder %s14, 1
      %p141 = por %p139, %p140
      %p142 = scmp.ne.s32.totalorder %s134, %s137
      %p143 = scmp.eq.s32.totalorder %s14, 0
      %p144 = por %p142, %p143
      %p145 = scmp.ne.s32.totalorder %s134, %s137
      %p146 = scmp.eq.s32.totalorder %s19, 1
      %p147 = por %p145, %p146
      %p148 = scmp.ne.s32.totalorder %s137, %s138
      %p149 = scmp.eq.s32.totalorder %s19, 0
      %p150 = por %p148, %p149
      %p151 = scmp.ne.s32.totalorder %s137, %s138
      %p152 = scmp.eq.s32.totalorder %s20, 1
      %p153 = por %p151, %p152
      %p155 = scmp.ne.s32.totalorder %s138, %s154
      %p156 = scmp.eq.s32.totalorder %s20, 0
      %p157 = por %p155, %p156
      %p158 = scmp.le.s32.totalorder 1, %s14
      %p159 = scmp.lt.s32.totalorder %s14, 3
      %p160 = pnand %p158, %p159
      %p161 = pneg %p160
      // Predicated region
      $region9: #{tpu_custom_call.1} parent=5 // pred_check
        _
      $region10: #{tpu_custom_call.1} parent=5 // pred_check_branch
        %163 = sbr.rel (%p160) target = $region12
      $region11: #{tpu_custom_call.1} parent=5 // pred_region
        %s164 = ssub.s32 %s14, 1
        // Predicated region
        $region13: #{tpu_custom_call.1} parent=11 // pred_check
          %p165 = pneg %p61
        $region14: #{tpu_custom_call.1} parent=11 // pred_check_branch
          %167 = sbr.rel (%p165) target = $region16
        $region15: #{tpu_custom_call.1} parent=11 // pred_region
          _
        $region16: #{tpu_custom_call.1} parent=11 // pred_fallthru
          _
        // Predicated region
        $region17: #{tpu_custom_call.1} parent=11 // pred_check
          %p168 = pneg %p82
        $region18: #{tpu_custom_call.1} parent=11 // pred_check_branch
          %170 = sbr.rel (%p168) target = $region20
        $region19: #{tpu_custom_call.1} parent=11 // pred_region
          _
        $region20: #{tpu_custom_call.1} parent=11 // pred_fallthru
          _
        // Predicated region
        $region21: #{tpu_custom_call.1} parent=11 // pred_check
          %p171 = pneg %p103
        $region22: #{tpu_custom_call.1} parent=11 // pred_check_branch
          %173 = sbr.rel (%p171) target = $region24
        $region23: #{tpu_custom_call.1} parent=11 // pred_region
          _
        $region24: #{tpu_custom_call.1} parent=11 // pred_fallthru
          _
        // Predicated region
        $region25: #{tpu_custom_call.1} parent=11 // pred_check
          %p174 = pneg %p124
        $region26: #{tpu_custom_call.1} parent=11 // pred_check_branch
          %176 = sbr.rel (%p174) target = $region28
        $region27: #{tpu_custom_call.1} parent=11 // pred_region
          _
        $region28: #{tpu_custom_call.1} parent=11 // pred_fallthru
          _
      $region12: #{tpu_custom_call.1} parent=5 // pred_fallthru
        _
      %p177 = scmp.lt.s32.totalorder %s14, 2
      // Predicated region
      $region29: #{tpu_custom_call.1} parent=5 // pred_check
        %p178 = pneg %p177
      $region30: #{tpu_custom_call.1} parent=5 // pred_check_branch
        %180 = sbr.rel (%p178) target = $region32
      $region31: #{tpu_custom_call.1} parent=5 // pred_region
        // Predicated region
        $region33: #{tpu_custom_call.1} parent=31 // pred_check
          %p181 = pneg %p34
        $region34: #{tpu_custom_call.1} parent=31 // pred_check_branch
          %183 = sbr.rel (%p181) target = $region36
        $region35: #{tpu_custom_call.1} parent=31 // pred_region
          %p184 = scmp.lt.s32.totalorder %s14, 1
          %s185 = scalar_select %p184, %s14, 1
          %s186 = smul.addr %s185, 64
          %s187 = smul.addr %s186, 4
          %s188 = scalar_lea.vmem %s0, %s187
        $region36: #{tpu_custom_call.1} parent=31 // pred_fallthru
          _
      $region32: #{tpu_custom_call.1} parent=5 // pred_fallthru
        _
      %p189 = scmp.le.s32.totalorder 1, %s14
      %p190 = scmp.lt.s32.totalorder %s14, 3
      %p191 = pnand %p189, %p190
      %p192 = pneg %p191
      // Predicated region
      $region37: #{tpu_custom_call.1} parent=5 // pred_check
        _
      $region38: #{tpu_custom_call.1} parent=5 // pred_check_branch
        %194 = sbr.rel (%p191) target = $region40
      $region39: #{tpu_custom_call.1} parent=5 // pred_region
        %s195 = ssub.s32 %s14, 1
        %p196 = scmp.lt.s32.totalorder %s19, 1
        %s197 = scalar_select %p196, %s19, 1
        %s198 = smul.addr %s197, 64
        %s199 = smul.addr %s198, 4
        %s200 = scalar_lea.vmem %s0, %s199
        %p201 = pneg %p40
        %p202 = pneg %p37
        %p203 = pneg %p61
        %p204 = pneg %p58
        %p205 = pneg %p82
        %p206 = pneg %p79
        %p207 = pneg %p103
        %p208 = pneg %p100
        %p209 = pneg %p124
        %p210 = pneg %p121
        %p211 = pneg %p150
        %p212 = pneg %p147
        %s213 = sand.u32 %s137, 1
        %s214 = scalar_lea.sflag [#allocation4], %s213
        %s215 = sand.u32 %s137, 1
        %s216 = smul.addr %s215, 2
        %s217 = scalar_lea.vmem [#allocation3], %s216
        %p218 = scmp.lt.s32.totalorder %s19, 1
        %s219 = scalar_select %p218, %s19, 1
        %s220 = smul.addr %s219, 64
        %s221 = smul.addr %s220, 4
        %s222 = scalar_lea.vmem %s0, %s221
        %v224 = vld [vmem:[%s222] sm:$0xf]
        %v225 = vld [vmem:[%s222 + $0x4] sm:$0xf]
        %v226 = vld [vmem:[%s222 + $0x8] sm:$0xf]
        %v227 = vld [vmem:[%s222 + $0xc] sm:$0xf]
        %v228 = vld [vmem:[%s222 + $0x10] sm:$0xf]
        %v229 = vld [vmem:[%s222 + $0x14] sm:$0xf]
        %v230 = vld [vmem:[%s222 + $0x18] sm:$0xf]
        %v231 = vld [vmem:[%s222 + $0x1c] sm:$0xf]
        %v232 = vld [vmem:[%s222 + $0x20] sm:$0xf]
        %v233 = vld [vmem:[%s222 + $0x24] sm:$0xf]
        %v234 = vld [vmem:[%s222 + $0x28] sm:$0xf]
        %v235 = vld [vmem:[%s222 + $0x2c] sm:$0xf]
        %v236 = vld [vmem:[%s222 + $0x30] sm:$0xf]
        %v237 = vld [vmem:[%s222 + $0x34] sm:$0xf]
        %v238 = vld [vmem:[%s222 + $0x38] sm:$0xf]
        %v239 = vld [vmem:[%s222 + $0x3c] sm:$0xf]
        %v240 = vld [vmem:[%s222 + $0x40] sm:$0xf]
        %v241 = vld [vmem:[%s222 + $0x44] sm:$0xf]
        %v242 = vld [vmem:[%s222 + $0x48] sm:$0xf]
        %v243 = vld [vmem:[%s222 + $0x4c] sm:$0xf]
        %v244 = vld [vmem:[%s222 + $0x50] sm:$0xf]
        %v245 = vld [vmem:[%s222 + $0x54] sm:$0xf]
        %v246 = vld [vmem:[%s222 + $0x58] sm:$0xf]
        %v247 = vld [vmem:[%s222 + $0x5c] sm:$0xf]
        %v248 = vld [vmem:[%s222 + $0x60] sm:$0xf]
        %v249 = vld [vmem:[%s222 + $0x64] sm:$0xf]
        %v250 = vld [vmem:[%s222 + $0x68] sm:$0xf]
        %v251 = vld [vmem:[%s222 + $0x6c] sm:$0xf]
        %v252 = vld [vmem:[%s222 + $0x70] sm:$0xf]
        %v253 = vld [vmem:[%s222 + $0x74] sm:$0xf]
        %v254 = vld [vmem:[%s222 + $0x78] sm:$0xf]
        %v255 = vld [vmem:[%s222 + $0x7c] sm:$0xf]
        %v256 = vld [vmem:[%s222 + $0x80] sm:$0xf]
        %v257 = vld [vmem:[%s222 + $0x84] sm:$0xf]
        %v258 = vld [vmem:[%s222 + $0x88] sm:$0xf]
        %v259 = vld [vmem:[%s222 + $0x8c] sm:$0xf]
        %v260 = vld [vmem:[%s222 + $0x90] sm:$0xf]
        %v261 = vld [vmem:[%s222 + $0x94] sm:$0xf]
        %v262 = vld [vmem:[%s222 + $0x98] sm:$0xf]
        %v263 = vld [vmem:[%s222 + $0x9c] sm:$0xf]
        %v264 = vld [vmem:[%s222 + $0xa0] sm:$0xf]
        %v265 = vld [vmem:[%s222 + $0xa4] sm:$0xf]
        %v266 = vld [vmem:[%s222 + $0xa8] sm:$0xf]
        %v267 = vld [vmem:[%s222 + $0xac] sm:$0xf]
        %v268 = vld [vmem:[%s222 + $0xb0] sm:$0xf]
        %v269 = vld [vmem:[%s222 + $0xb4] sm:$0xf]
        %v270 = vld [vmem:[%s222 + $0xb8] sm:$0xf]
        %v271 = vld [vmem:[%s222 + $0xbc] sm:$0xf]
        %v272 = vld [vmem:[%s222 + $0xc0] sm:$0xf]
        %v273 = vld [vmem:[%s222 + $0xc4] sm:$0xf]
        %v274 = vld [vmem:[%s222 + $0xc8] sm:$0xf]
        %v275 = vld [vmem:[%s222 + $0xcc] sm:$0xf]
        %v276 = vld [vmem:[%s222 + $0xd0] sm:$0xf]
        %v277 = vld [vmem:[%s222 + $0xd4] sm:$0xf]
        %v278 = vld [vmem:[%s222 + $0xd8] sm:$0xf]
        %v279 = vld [vmem:[%s222 + $0xdc] sm:$0xf]
        %v280 = vld [vmem:[%s222 + $0xe0] sm:$0xf]
        %v281 = vld [vmem:[%s222 + $0xe4] sm:$0xf]
        %v282 = vld [vmem:[%s222 + $0xe8] sm:$0xf]
        %v283 = vld [vmem:[%s222 + $0xec] sm:$0xf]
        %v284 = vld [vmem:[%s222 + $0xf0] sm:$0xf]
        %v285 = vld [vmem:[%s222 + $0xf4] sm:$0xf]
        %v286 = vld [vmem:[%s222 + $0xf8] sm:$0xf]
        %v287 = vld [vmem:[%s222 + $0xfc] sm:$0xf]
        %v288 = vld [vmem:[%s1] sm:$0xf]
        %v289 = vld [vmem:[%s1 + $0x4] sm:$0xf]
        %v290 = vld [vmem:[%s1 + $0x8] sm:$0xf]
        %v291 = vld [vmem:[%s1 + $0xc] sm:$0xf]
        %v292 = vld [vmem:[%s1 + $0x10] sm:$0x3]
        %v293 = vld [vmem:[%s2] sm:$0x1]
        %v295 = vlaneseq
        %v296 = vshrl.u32 %v295, 7
        %v297 = vsub.s32 0, %v296
        %v298 = vrot.slane %v293, %v297
        %v364 = vunpack.c.l.b16 %v224
        %v365 = vunpack.c.l.b16 %v225
        %v366 = vunpack.c.l.b16 %v226
        %v367 = vunpack.c.l.b16 %v227
        %v368 = vunpack.c.l.b16 %v228
        %v369 = vunpack.c.l.b16 %v229
        %v370 = vunpack.c.l.b16 %v230
        %v371 = vunpack.c.l.b16 %v231
        %v372 = vunpack.c.l.b16 %v232
        %v373 = vunpack.c.l.b16 %v233
        %v374 = vunpack.c.l.b16 %v234
        %v375 = vunpack.c.l.b16 %v235
        %v376 = vunpack.c.l.b16 %v236
        %v377 = vunpack.c.l.b16 %v237
        %v378 = vunpack.c.l.b16 %v238
        %v379 = vunpack.c.l.b16 %v239
        %v380 = vunpack.c.l.b16 %v240
        %v381 = vunpack.c.l.b16 %v241
        %v382 = vunpack.c.l.b16 %v242
        %v383 = vunpack.c.l.b16 %v243
        %v384 = vunpack.c.l.b16 %v244
        %v385 = vunpack.c.l.b16 %v245
        %v386 = vunpack.c.l.b16 %v246
        %v387 = vunpack.c.l.b16 %v247
        %v388 = vunpack.c.l.b16 %v248
        %v389 = vunpack.c.l.b16 %v249
        %v390 = vunpack.c.l.b16 %v250
        %v391 = vunpack.c.l.b16 %v251
        %v392 = vunpack.c.l.b16 %v252
        %v393 = vunpack.c.l.b16 %v253
        %v394 = vunpack.c.l.b16 %v254
        %v395 = vunpack.c.l.b16 %v255
        %v396 = vunpack.c.l.b16 %v256
        %v397 = vunpack.c.l.b16 %v257
        %v398 = vunpack.c.l.b16 %v258
        %v399 = vunpack.c.l.b16 %v259
        %v400 = vunpack.c.l.b16 %v260
        %v401 = vunpack.c.l.b16 %v261
        %v402 = vunpack.c.l.b16 %v262
        %v403 = vunpack.c.l.b16 %v263
        %v404 = vunpack.c.l.b16 %v264
        %v405 = vunpack.c.l.b16 %v265
        %v406 = vunpack.c.l.b16 %v266
        %v407 = vunpack.c.l.b16 %v267
        %v408 = vunpack.c.l.b16 %v268
        %v409 = vunpack.c.l.b16 %v269
        %v410 = vunpack.c.l.b16 %v270
        %v411 = vunpack.c.l.b16 %v271
        %v412 = vunpack.c.l.b16 %v272
        %v413 = vunpack.c.l.b16 %v273
        %v414 = vunpack.c.l.b16 %v274
        %v415 = vunpack.c.l.b16 %v275
        %v416 = vunpack.c.l.b16 %v276
        %v417 = vunpack.c.l.b16 %v277
        %v418 = vunpack.c.l.b16 %v278
        %v419 = vunpack.c.l.b16 %v279
        %v420 = vunpack.c.l.b16 %v280
        %v421 = vunpack.c.l.b16 %v281
        %v422 = vunpack.c.l.b16 %v282
        %v423 = vunpack.c.l.b16 %v283
        %v424 = vunpack.c.l.b16 %v284
        %v425 = vunpack.c.l.b16 %v285
        %v426 = vunpack.c.l.b16 %v286
        %v427 = vunpack.c.l.b16 %v287
        %v428 = vpack.c.b16 %v365, %v364
        %v429 = vpack.c.b16 %v367, %v366
        %v430 = vpack.c.b16 %v369, %v368
        %v431 = vpack.c.b16 %v371, %v370
        %v432 = vpack.c.b16 %v373, %v372
        %v433 = vpack.c.b16 %v375, %v374
        %v434 = vpack.c.b16 %v377, %v376
        %v435 = vpack.c.b16 %v379, %v378
        %v436 = vpack.c.b16 %v381, %v380
        %v437 = vpack.c.b16 %v383, %v382
        %v438 = vpack.c.b16 %v385, %v384
        %v439 = vpack.c.b16 %v387, %v386
        %v440 = vpack.c.b16 %v389, %v388
        %v441 = vpack.c.b16 %v391, %v390
        %v442 = vpack.c.b16 %v393, %v392
        %v443 = vpack.c.b16 %v395, %v394
        %v444 = vpack.c.b16 %v397, %v396
        %v445 = vpack.c.b16 %v399, %v398
        %v446 = vpack.c.b16 %v401, %v400
        %v447 = vpack.c.b16 %v403, %v402
        %v448 = vpack.c.b16 %v405, %v404
        %v449 = vpack.c.b16 %v407, %v406
        %v450 = vpack.c.b16 %v409, %v408
        %v451 = vpack.c.b16 %v411, %v410
        %v452 = vpack.c.b16 %v413, %v412
        %v453 = vpack.c.b16 %v415, %v414
        %v454 = vpack.c.b16 %v417, %v416
        %v455 = vpack.c.b16 %v419, %v418
        %v456 = vpack.c.b16 %v421, %v420
        %v457 = vpack.c.b16 %v423, %v422
        %v458 = vpack.c.b16 %v425, %v424
        %v459 = vpack.c.b16 %v427, %v426
        %v465 = vunpack.c.l.b16 %v288
        %v466 = vunpack.c.l.b16 %v289
        %v467 = vunpack.c.l.b16 %v290
        %v468 = vunpack.c.l.b16 %v291
        %v469 = vunpack.c.l.b16 %v292
        %v470 = vpack.c.b16 %v466, %v465
        %v471 = vpack.c.b16 %v468, %v467
        %v472 = vpack.c.b16 %v469, %v469
        %vm475 = vcmask 293888
        %v477 = vsel %vm475, %v428, 0
        %v480 = vsel %vm475, %v429, 0
        %v483 = vsel %vm475, %v430, 0
        %v486 = vsel %vm475, %v431, 0
        %v489 = vsel %vm475, %v432, 0
        %v492 = vsel %vm475, %v433, 0
        %v495 = vsel %vm475, %v434, 0
        %v498 = vsel %vm475, %v435, 0
        %v501 = vsel %vm475, %v436, 0
        %v504 = vsel %vm475, %v437, 0
        %v507 = vsel %vm475, %v438, 0
        %v510 = vsel %vm475, %v439, 0
        %v513 = vsel %vm475, %v440, 0
        %v516 = vsel %vm475, %v441, 0
        %v519 = vsel %vm475, %v442, 0
        %v522 = vsel %vm475, %v443, 0
        %v525 = vsel %vm475, %v444, 0
        %v528 = vsel %vm475, %v445, 0
        %v531 = vsel %vm475, %v446, 0
        %v534 = vsel %vm475, %v447, 0
        %v537 = vsel %vm475, %v448, 0
        %v540 = vsel %vm475, %v449, 0
        %v543 = vsel %vm475, %v450, 0
        %v546 = vsel %vm475, %v451, 0
        %v549 = vsel %vm475, %v452, 0
        %v552 = vsel %vm475, %v453, 0
        %v555 = vsel %vm475, %v454, 0
        %v558 = vsel %vm475, %v455, 0
        %v561 = vsel %vm475, %v456, 0
        %v564 = vsel %vm475, %v457, 0
        %v567 = vsel %vm475, %v458, 0
        %v570 = vsel %vm475, %v459, 0
        %vm572 = vcmask 1041408
        %v574 = vsel %vm572, %v472, 0
        %576 = vmatprep.subr.bf16.mxu0 0
        %577 = vmatpush1.bf16.msra.mxu0 %v470
        %578 = vmatprep.subr.bf16.mxu0 0
        %579 = vmatpush1.bf16.msra.mxu0 %v471
        %580 = vmatprep.subr.bf16.mxu0 0
        %581 = vmatpush1.bf16.msra.mxu0 %v574
        %582 = vmatprep.subr.bf16.mxu0 0
        %583 = vmatpush1.bf16.msra.mxu0 0
        %584 = vmatprep.subr.bf16.mxu0 0
        %585 = vmatpush1.bf16.msra.mxu0 0
        %586 = vmatprep.subr.bf16.mxu0 0
        %587 = vmatpush1.bf16.msra.mxu0 0
        %588 = vmatprep.subr.bf16.mxu0 0
        %589 = vmatpush1.bf16.msra.mxu0 0
        %590 = vmatprep.subr.bf16.mxu0 0
        %591 = vmatpush1.bf16.msra.mxu0 0
        %592 = vmatprep.subr.bf16.mxu0 0
        %593 = vmatpush1.bf16.msra.mxu0 0
        %594 = vmatprep.subr.bf16.mxu0 0
        %595 = vmatpush1.bf16.msra.mxu0 0
        %596 = vmatprep.subr.bf16.mxu0 0
        %597 = vmatpush1.bf16.msra.mxu0 0
        %598 = vmatprep.subr.bf16.mxu0 0
        %599 = vmatpush1.bf16.msra.mxu0 0
        %600 = vmatprep.subr.bf16.mxu0 0
        %601 = vmatpush1.bf16.msra.mxu0 0
        %602 = vmatprep.subr.bf16.mxu0 0
        %603 = vmatpush1.bf16.msra.mxu0 0
        %604 = vmatprep.subr.bf16.mxu0 0
        %605 = vmatpush1.bf16.msra.mxu0 0
        %606 = vmatprep.subr.bf16.mxu0 0
        %607 = vmatpush1.bf16.msra.mxu0 0
        %608 = vmatprep.mubr.bf16.mxu0 0
        %609 = vmatmul.mubr.bf16.gmra.mrb[0].mxu0 %v477
        %v610 = vpop.f32.mrb[0].mxu0
        %v611 = vadd.f32 %v298, %v610
        %v612 = vpop.f32.mrb[0].mxu0
        %v613 = vpop.f32.mrb[0].mxu0
        %v614 = vadd.f32 %v298, %v613
        %v615 = vpop.f32.mrb[0].mxu0
        %616 = vmatprep.mubr.bf16.mxu0 0
        %617 = vmatmul.mubr.bf16.gmra.mrb[0].mxu0 %v480
        %v618 = vpop.f32.mrb[0].mxu0
        %v619 = vadd.f32 %v298, %v618
        %v620 = vpop.f32.mrb[0].mxu0
        %v621 = vpop.f32.mrb[0].mxu0
        %v622 = vadd.f32 %v298, %v621
        %v623 = vpop.f32.mrb[0].mxu0
        %624 = vmatprep.mubr.bf16.mxu0 0
        %625 = vmatmul.mubr.bf16.gmra.mrb[0].mxu0 %v483
        %v626 = vpop.f32.mrb[0].mxu0
        %v627 = vadd.f32 %v298, %v626
        %v628 = vpop.f32.mrb[0].mxu0
        %v629 = vpop.f32.mrb[0].mxu0
        %v630 = vadd.f32 %v298, %v629
        %v631 = vpop.f32.mrb[0].mxu0
        %632 = vmatprep.mubr.bf16.mxu0 0
        %633 = vmatmul.mubr.bf16.gmra.mrb[0].mxu0 %v486
        %v634 = vpop.f32.mrb[0].mxu0
        %v635 = vadd.f32 %v298, %v634
        %v636 = vpop.f32.mrb[0].mxu0
        %v637 = vpop.f32.mrb[0].mxu0
        %v638 = vadd.f32 %v298, %v637
        %v639 = vpop.f32.mrb[0].mxu0
        %640 = vmatprep.mubr.bf16.mxu0 0
        %641 = vmatmul.mubr.bf16.gmra.mrb[0].mxu0 %v489
        %v642 = vpop.f32.mrb[0].mxu0
        %v643 = vadd.f32 %v298, %v642
        %v644 = vpop.f32.mrb[0].mxu0
        %v645 = vpop.f32.mrb[0].mxu0
        %v646 = vadd.f32 %v298, %v645
        %v647 = vpop.f32.mrb[0].mxu0
        %648 = vmatprep.mubr.bf16.mxu0 0
        %649 = vmatmul.mubr.bf16.gmra.mrb[0].mxu0 %v492
        %v650 = vpop.f32.mrb[0].mxu0
        %v651 = vadd.f32 %v298, %v650
        %v652 = vpop.f32.mrb[0].mxu0
        %v653 = vpop.f32.mrb[0].mxu0
        %v654 = vadd.f32 %v298, %v653
        %v655 = vpop.f32.mrb[0].mxu0
        %656 = vmatprep.mubr.bf16.mxu0 0
        %657 = vmatmul.mubr.bf16.gmra.mrb[0].mxu0 %v495
        %v658 = vpop.f32.mrb[0].mxu0
        %v659 = vadd.f32 %v298, %v658
        %v660 = vpop.f32.mrb[0].mxu0
        %v661 = vpop.f32.mrb[0].mxu0
        %v662 = vadd.f32 %v298, %v661
        %v663 = vpop.f32.mrb[0].mxu0
        %664 = vmatprep.mubr.bf16.mxu0 0
        %665 = vmatmul.mubr.bf16.gmra.mrb[0].mxu0 %v498
        %v666 = vpop.f32.mrb[0].mxu0
        %v667 = vadd.f32 %v298, %v666
        %v668 = vpop.f32.mrb[0].mxu0
        %v669 = vpop.f32.mrb[0].mxu0
        %v670 = vadd.f32 %v298, %v669
        %v671 = vpop.f32.mrb[0].mxu0
        %672 = vmatprep.mubr.bf16.mxu0 0
        %673 = vmatmul.mubr.bf16.gmra.mrb[0].mxu0 %v501
        %v674 = vpop.f32.mrb[0].mxu0
        %v675 = vadd.f32 %v298, %v674
        %v676 = vpop.f32.mrb[0].mxu0
        %v677 = vpop.f32.mrb[0].mxu0
        %v678 = vadd.f32 %v298, %v677
        %v679 = vpop.f32.mrb[0].mxu0
        %680 = vmatprep.mubr.bf16.mxu0 0
        %681 = vmatmul.mubr.bf16.gmra.mrb[0].mxu0 %v504
        %v682 = vpop.f32.mrb[0].mxu0
        %v683 = vadd.f32 %v298, %v682
        %v684 = vpop.f32.mrb[0].mxu0
        %v685 = vpop.f32.mrb[0].mxu0
        %v686 = vadd.f32 %v298, %v685
        %v687 = vpop.f32.mrb[0].mxu0
        %688 = vmatprep.mubr.bf16.mxu0 0
        %689 = vmatmul.mubr.bf16.gmra.mrb[0].mxu0 %v507
        %v690 = vpop.f32.mrb[0].mxu0
        %v691 = vadd.f32 %v298, %v690
        %v692 = vpop.f32.mrb[0].mxu0
        %v693 = vpop.f32.mrb[0].mxu0
        %v694 = vadd.f32 %v298, %v693
        %v695 = vpop.f32.mrb[0].mxu0
        %696 = vmatprep.mubr.bf16.mxu0 0
        %697 = vmatmul.mubr.bf16.gmra.mrb[0].mxu0 %v510
        %v698 = vpop.f32.mrb[0].mxu0
        %v699 = vadd.f32 %v298, %v698
        %v700 = vpop.f32.mrb[0].mxu0
        %v701 = vpop.f32.mrb[0].mxu0
        %v702 = vadd.f32 %v298, %v701
        %v703 = vpop.f32.mrb[0].mxu0
        %704 = vmatprep.mubr.bf16.mxu0 0
        %705 = vmatmul.mubr.bf16.gmra.mrb[0].mxu0 %v513
        %v706 = vpop.f32.mrb[0].mxu0
        %v707 = vadd.f32 %v298, %v706
        %v708 = vpop.f32.mrb[0].mxu0
        %v709 = vpop.f32.mrb[0].mxu0
        %v710 = vadd.f32 %v298, %v709
        %v711 = vpop.f32.mrb[0].mxu0
        %712 = vmatprep.mubr.bf16.mxu0 0
        %713 = vmatmul.mubr.bf16.gmra.mrb[0].mxu0 %v516
        %v714 = vpop.f32.mrb[0].mxu0
        %v715 = vadd.f32 %v298, %v714
        %v716 = vpop.f32.mrb[0].mxu0
        %v717 = vpop.f32.mrb[0].mxu0
        %v718 = vadd.f32 %v298, %v717
        %v719 = vpop.f32.mrb[0].mxu0
        %720 = vmatprep.mubr.bf16.mxu0 0
        %721 = vmatmul.mubr.bf16.gmra.mrb[0].mxu0 %v519
        %v722 = vpop.f32.mrb[0].mxu0
        %v723 = vadd.f32 %v298, %v722
        %v724 = vpop.f32.mrb[0].mxu0
        %v725 = vpop.f32.mrb[0].mxu0
        %v726 = vadd.f32 %v298, %v725
        %v727 = vpop.f32.mrb[0].mxu0
        %728 = vmatprep.mubr.bf16.mxu0 0
        %729 = vmatmul.mubr.bf16.gmra.mrb[0].mxu0 %v522
        %v730 = vpop.f32.mrb[0].mxu0
        %v731 = vadd.f32 %v298, %v730
        %v732 = vpop.f32.mrb[0].mxu0
        %v733 = vpop.f32.mrb[0].mxu0
        %v734 = vadd.f32 %v298, %v733
        %v735 = vpop.f32.mrb[0].mxu0
        %736 = vmatprep.mubr.bf16.mxu0 0
        %737 = vmatmul.mubr.bf16.gmra.mrb[0].mxu0 %v525
        %v738 = vpop.f32.mrb[0].mxu0
        %v739 = vadd.f32 %v298, %v738
        %v740 = vpop.f32.mrb[0].mxu0
        %v741 = vpop.f32.mrb[0].mxu0
        %v742 = vadd.f32 %v298, %v741
        %v743 = vpop.f32.mrb[0].mxu0
        %744 = vmatprep.mubr.bf16.mxu0 0
        %745 = vmatmul.mubr.bf16.gmra.mrb[0].mxu0 %v528
        %v746 = vpop.f32.mrb[0].mxu0
        %v747 = vadd.f32 %v298, %v746
        %v748 = vpop.f32.mrb[0].mxu0
        %v749 = vpop.f32.mrb[0].mxu0
        %v750 = vadd.f32 %v298, %v749
        %v751 = vpop.f32.mrb[0].mxu0
        %752 = vmatprep.mubr.bf16.mxu0 0
        %753 = vmatmul.mubr.bf16.gmra.mrb[0].mxu0 %v531
        %v754 = vpop.f32.mrb[0].mxu0
        %v755 = vadd.f32 %v298, %v754
        %v756 = vpop.f32.mrb[0].mxu0
        %v757 = vpop.f32.mrb[0].mxu0
        %v758 = vadd.f32 %v298, %v757
        %v759 = vpop.f32.mrb[0].mxu0
        %760 = vmatprep.mubr.bf16.mxu0 0
        %761 = vmatmul.mubr.bf16.gmra.mrb[0].mxu0 %v534
        %v762 = vpop.f32.mrb[0].mxu0
        %v763 = vadd.f32 %v298, %v762
        %v764 = vpop.f32.mrb[0].mxu0
        %v765 = vpop.f32.mrb[0].mxu0
        %v766 = vadd.f32 %v298, %v765
        %v767 = vpop.f32.mrb[0].mxu0
        %768 = vmatprep.mubr.bf16.mxu0 0
        %769 = vmatmul.mubr.bf16.gmra.mrb[0].mxu0 %v537
        %v770 = vpop.f32.mrb[0].mxu0
        %v771 = vadd.f32 %v298, %v770
        %v772 = vpop.f32.mrb[0].mxu0
        %v773 = vpop.f32.mrb[0].mxu0
        %v774 = vadd.f32 %v298, %v773
        %v775 = vpop.f32.mrb[0].mxu0
        %776 = vmatprep.mubr.bf16.mxu0 0
        %777 = vmatmul.mubr.bf16.gmra.mrb[0].mxu0 %v540
        %v778 = vpop.f32.mrb[0].mxu0
        %v779 = vadd.f32 %v298, %v778
        %v780 = vpop.f32.mrb[0].mxu0
        %v781 = vpop.f32.mrb[0].mxu0
        %v782 = vadd.f32 %v298, %v781
        %v783 = vpop.f32.mrb[0].mxu0
        %784 = vmatprep.mubr.bf16.mxu0 0
        %785 = vmatmul.mubr.bf16.gmra.mrb[0].mxu0 %v543
        %v786 = vpop.f32.mrb[0].mxu0
        %v787 = vadd.f32 %v298, %v786
        %v788 = vpop.f32.mrb[0].mxu0
        %v789 = vpop.f32.mrb[0].mxu0
        %v790 = vadd.f32 %v298, %v789
        %v791 = vpop.f32.mrb[0].mxu0
        %792 = vmatprep.mubr.bf16.mxu0 0
        %793 = vmatmul.mubr.bf16.gmra.mrb[0].mxu0 %v546
        %v794 = vpop.f32.mrb[0].mxu0
        %v795 = vadd.f32 %v298, %v794
        %v796 = vpop.f32.mrb[0].mxu0
        %v797 = vpop.f32.mrb[0].mxu0
        %v798 = vadd.f32 %v298, %v797
        %v799 = vpop.f32.mrb[0].mxu0
        %800 = vmatprep.mubr.bf16.mxu0 0
        %801 = vmatmul.mubr.bf16.gmra.mrb[0].mxu0 %v549
        %v802 = vpop.f32.mrb[0].mxu0
        %v803 = vadd.f32 %v298, %v802
        %v804 = vpop.f32.mrb[0].mxu0
        %v805 = vpop.f32.mrb[0].mxu0
        %v806 = vadd.f32 %v298, %v805
        %v807 = vpop.f32.mrb[0].mxu0
        %808 = vmatprep.mubr.bf16.mxu0 0
        %809 = vmatmul.mubr.bf16.gmra.mrb[0].mxu0 %v552
        %v810 = vpop.f32.mrb[0].mxu0
        %v811 = vadd.f32 %v298, %v810
        %v812 = vpop.f32.mrb[0].mxu0
        %v813 = vpop.f32.mrb[0].mxu0
        %v814 = vadd.f32 %v298, %v813
        %v815 = vpop.f32.mrb[0].mxu0
        %816 = vmatprep.mubr.bf16.mxu0 0
        %817 = vmatmul.mubr.bf16.gmra.mrb[0].mxu0 %v555
        %v818 = vpop.f32.mrb[0].mxu0
        %v819 = vadd.f32 %v298, %v818
        %v820 = vpop.f32.mrb[0].mxu0
        %v821 = vpop.f32.mrb[0].mxu0
        %v822 = vadd.f32 %v298, %v821
        %v823 = vpop.f32.mrb[0].mxu0
        %824 = vmatprep.mubr.bf16.mxu0 0
        %825 = vmatmul.mubr.bf16.gmra.mrb[0].mxu0 %v558
        %v826 = vpop.f32.mrb[0].mxu0
        %v827 = vadd.f32 %v298, %v826
        %v828 = vpop.f32.mrb[0].mxu0
        %v829 = vpop.f32.mrb[0].mxu0
        %v830 = vadd.f32 %v298, %v829
        %v831 = vpop.f32.mrb[0].mxu0
        %832 = vmatprep.mubr.bf16.mxu0 0
        %833 = vmatmul.mubr.bf16.gmra.mrb[0].mxu0 %v561
        %v834 = vpop.f32.mrb[0].mxu0
        %v835 = vadd.f32 %v298, %v834
        %v836 = vpop.f32.mrb[0].mxu0
        %v837 = vpop.f32.mrb[0].mxu0
        %v838 = vadd.f32 %v298, %v837
        %v839 = vpop.f32.mrb[0].mxu0
        %840 = vmatprep.mubr.bf16.mxu0 0
        %841 = vmatmul.mubr.bf16.gmra.mrb[0].mxu0 %v564
        %v842 = vpop.f32.mrb[0].mxu0
        %v843 = vadd.f32 %v298, %v842
        %v844 = vpop.f32.mrb[0].mxu0
        %v845 = vpop.f32.mrb[0].mxu0
        %v846 = vadd.f32 %v298, %v845
        %v847 = vpop.f32.mrb[0].mxu0
        %848 = vmatprep.mubr.bf16.mxu0 0
        %849 = vmatmul.mubr.bf16.gmra.mrb[0].mxu0 %v567
        %v850 = vpop.f32.mrb[0].mxu0
        %v851 = vadd.f32 %v298, %v850
        %v852 = vpop.f32.mrb[0].mxu0
        %v853 = vpop.f32.mrb[0].mxu0
        %v854 = vadd.f32 %v298, %v853
        %v855 = vpop.f32.mrb[0].mxu0
        %856 = vmatprep.mubr.bf16.mxu0 0
        %857 = vmatmul.mubr.bf16.gmra.mrb[0].mxu0 %v570
        %v858 = vpop.f32.mrb[0].mxu0
        %v859 = vadd.f32 %v298, %v858
        %v860 = vpop.f32.mrb[0].mxu0
        %v861 = vpop.f32.mrb[0].mxu0
        %v862 = vadd.f32 %v298, %v861
        %v863 = vpop.f32.mrb[0].mxu0
        %864 = vdwg.mxu0
        %v865 = vmax.f32 %v611, 0.0
        %v866 = vmax.f32 %v614, 0.0
        %v867 = vmax.f32 %v619, 0.0
        %v868 = vmax.f32 %v622, 0.0
        %v869 = vmax.f32 %v627, 0.0
        %v870 = vmax.f32 %v630, 0.0
        %v871 = vmax.f32 %v635, 0.0
        %v872 = vmax.f32 %v638, 0.0
        %v873 = vmax.f32 %v643, 0.0
        %v874 = vmax.f32 %v646, 0.0
        %v875 = vmax.f32 %v651, 0.0
        %v876 = vmax.f32 %v654, 0.0
        %v877 = vmax.f32 %v659, 0.0
        %v878 = vmax.f32 %v662, 0.0
        %v879 = vmax.f32 %v667, 0.0
        %v880 = vmax.f32 %v670, 0.0
        %v881 = vmax.f32 %v675, 0.0
        %v882 = vmax.f32 %v678, 0.0
        %v883 = vmax.f32 %v683, 0.0
        %v884 = vmax.f32 %v686, 0.0
        %v885 = vmax.f32 %v691, 0.0
        %v886 = vmax.f32 %v694, 0.0
        %v887 = vmax.f32 %v699, 0.0
        %v888 = vmax.f32 %v702, 0.0
        %v889 = vmax.f32 %v707, 0.0
        %v890 = vmax.f32 %v710, 0.0
        %v891 = vmax.f32 %v715, 0.0
        %v892 = vmax.f32 %v718, 0.0
        %v893 = vmax.f32 %v723, 0.0
        %v894 = vmax.f32 %v726, 0.0
        %v895 = vmax.f32 %v731, 0.0
        %v896 = vmax.f32 %v734, 0.0
        %v897 = vmax.f32 %v739, 0.0
        %v898 = vmax.f32 %v742, 0.0
        %v899 = vmax.f32 %v747, 0.0
        %v900 = vmax.f32 %v750, 0.0
        %v901 = vmax.f32 %v755, 0.0
        %v902 = vmax.f32 %v758, 0.0
        %v903 = vmax.f32 %v763, 0.0
        %v904 = vmax.f32 %v766, 0.0
        %v905 = vmax.f32 %v771, 0.0
        %v906 = vmax.f32 %v774, 0.0
        %v907 = vmax.f32 %v779, 0.0
        %v908 = vmax.f32 %v782, 0.0
        %v909 = vmax.f32 %v787, 0.0
        %v910 = vmax.f32 %v790, 0.0
        %v911 = vmax.f32 %v795, 0.0
        %v912 = vmax.f32 %v798, 0.0
        %v913 = vmax.f32 %v803, 0.0
        %v914 = vmax.f32 %v806, 0.0
        %v915 = vmax.f32 %v811, 0.0
        %v916 = vmax.f32 %v814, 0.0
        %v917 = vmax.f32 %v819, 0.0
        %v918 = vmax.f32 %v822, 0.0
        %v919 = vmax.f32 %v827, 0.0
        %v920 = vmax.f32 %v830, 0.0
        %v921 = vmax.f32 %v835, 0.0
        %v922 = vmax.f32 %v838, 0.0
        %v923 = vmax.f32 %v843, 0.0
        %v924 = vmax.f32 %v846, 0.0
        %v925 = vmax.f32 %v851, 0.0
        %v926 = vmax.f32 %v854, 0.0
        %v927 = vmax.f32 %v859, 0.0
        %v928 = vmax.f32 %v862, 0.0
        %v929 = vadd.f32 %v865, %v866
        %v930 = vadd.f32 %v929, %v867
        %v931 = vadd.f32 %v930, %v868
        %v932 = vadd.f32 %v931, %v869
        %v933 = vadd.f32 %v932, %v870
        %v934 = vadd.f32 %v933, %v871
        %v935 = vadd.f32 %v934, %v872
        %v936 = vadd.f32 %v935, %v873
        %v937 = vadd.f32 %v936, %v874
        %v938 = vadd.f32 %v937, %v875
        %v939 = vadd.f32 %v938, %v876
        %v940 = vadd.f32 %v939, %v877
        %v941 = vadd.f32 %v940, %v878
        %v942 = vadd.f32 %v941, %v879
        %v943 = vadd.f32 %v942, %v880
        %v944 = vadd.f32 %v943, %v881
        %v945 = vadd.f32 %v944, %v882
        %v946 = vadd.f32 %v945, %v883
        %v947 = vadd.f32 %v946, %v884
        %v948 = vadd.f32 %v947, %v885
        %v949 = vadd.f32 %v948, %v886
        %v950 = vadd.f32 %v949, %v887
        %v951 = vadd.f32 %v950, %v888
        %v952 = vadd.f32 %v951, %v889
        %v953 = vadd.f32 %v952, %v890
        %v954 = vadd.f32 %v953, %v891
        %v955 = vadd.f32 %v954, %v892
        %v956 = vadd.f32 %v955, %v893
        %v957 = vadd.f32 %v956, %v894
        %v958 = vadd.f32 %v957, %v895
        %v959 = vadd.f32 %v958, %v896
        %v960 = vrot.slane %v959, 4
        %v961 = vadd.f32 %v959, %v960
        %v962 = vrot.slane %v961, 2
        %v963 = vadd.f32 %v961, %v962
        %v964 = vrot.slane %v963, 1
        %v965 = vadd.f32 %v963, %v964
        %966 = vst [vmem:[#allocation2] sm:$0x1] %v965
        %v967 = vadd.f32 %v897, %v898
        %v968 = vadd.f32 %v967, %v899
        %v969 = vadd.f32 %v968, %v900
        %v970 = vadd.f32 %v969, %v901
        %v971 = vadd.f32 %v970, %v902
        %v972 = vadd.f32 %v971, %v903
        %v973 = vadd.f32 %v972, %v904
        %v974 = vadd.f32 %v973, %v905
        %v975 = vadd.f32 %v974, %v906
        %v976 = vadd.f32 %v975, %v907
        %v977 = vadd.f32 %v976, %v908
        %v978 = vadd.f32 %v977, %v909
        %v979 = vadd.f32 %v978, %v910
        %v980 = vadd.f32 %v979, %v911
        %v981 = vadd.f32 %v980, %v912
        %v982 = vadd.f32 %v981, %v913
        %v983 = vadd.f32 %v982, %v914
        %v984 = vadd.f32 %v983, %v915
        %v985 = vadd.f32 %v984, %v916
        %v986 = vadd.f32 %v985, %v917
        %v987 = vadd.f32 %v986, %v918
        %v988 = vadd.f32 %v987, %v919
        %v989 = vadd.f32 %v988, %v920
        %v990 = vadd.f32 %v989, %v921
        %v991 = vadd.f32 %v990, %v922
        %v992 = vadd.f32 %v991, %v923
        %v993 = vadd.f32 %v992, %v924
        %v994 = vadd.f32 %v993, %v925
        %v995 = vadd.f32 %v994, %v926
        %v996 = vadd.f32 %v995, %v927
        %v997 = vadd.f32 %v996, %v928
        %v998 = vrot.slane %v997, 4
        %v999 = vadd.f32 %v997, %v998
        %v1000 = vrot.slane %v999, 2
        %v1001 = vadd.f32 %v999, %v1000
        %v1002 = vrot.slane %v1001, 1
        %v1003 = vadd.f32 %v1001, %v1002
        %1004 = vst [vmem:[#allocation2 + $0x1] sm:$0x1] %v1003
        %v1005 = vld [vmem:[#allocation2] sm:$0x3]
        %v1006 = vmul.f32 %v1005, 0.00390625
        %v1007 = vpack.c.bf16 %v1006, %v1006
        %v1008 = vld [vmem:[%s3] sm:$0xf]
        %v1009 = vld [vmem:[%s3 + $0x4] sm:$0xf]
        %v1010 = vld [vmem:[%s3 + $0x8] sm:$0xf]
        %v1011 = vld [vmem:[%s3 + $0xc] sm:$0xf]
        %v1012 = vld [vmem:[%s3 + $0x10] sm:$0xf]
        %v1013 = vld [vmem:[%s3 + $0x14] sm:$0xf]
        %v1014 = vld [vmem:[%s3 + $0x18] sm:$0xf]
        %v1015 = vld [vmem:[%s3 + $0x1c] sm:$0xf]
        %v1016 = vld [vmem:[%s3 + $0x20] sm:$0xf]
        %v1017 = vld [vmem:[%s3 + $0x24] sm:$0xf]
        %v1018 = vld [vmem:[%s3 + $0x28] sm:$0xf]
        %v1019 = vld [vmem:[%s3 + $0x2c] sm:$0xf]
        %v1020 = vld [vmem:[%s3 + $0x30] sm:$0xf]
        %v1021 = vld [vmem:[%s3 + $0x34] sm:$0xf]
        %v1022 = vld [vmem:[%s3 + $0x38] sm:$0xf]
        %v1023 = vld [vmem:[%s3 + $0x3c] sm:$0xf]
        %v1024 = vld [vmem:[%s4] sm:$0x1]
        %v1026 = vlaneseq
        %v1027 = vshrl.u32 %v1026, 7
        %v1028 = vsub.s32 0, %v1027
        %v1029 = vrot.slane %v1024, %v1028
        %v1047 = vunpack.c.l.b16 %v1008
        %v1048 = vunpack.c.l.b16 %v1009
        %v1049 = vunpack.c.l.b16 %v1010
        %v1050 = vunpack.c.l.b16 %v1011
        %v1051 = vunpack.c.l.b16 %v1012
        %v1052 = vunpack.c.l.b16 %v1013
        %v1053 = vunpack.c.l.b16 %v1014
        %v1054 = vunpack.c.l.b16 %v1015
        %v1055 = vunpack.c.l.b16 %v1016
        %v1056 = vunpack.c.l.b16 %v1017
        %v1057 = vunpack.c.l.b16 %v1018
        %v1058 = vunpack.c.l.b16 %v1019
        %v1059 = vunpack.c.l.b16 %v1020
        %v1060 = vunpack.c.l.b16 %v1021
        %v1061 = vunpack.c.l.b16 %v1022
        %v1062 = vunpack.c.l.b16 %v1023
        %v1063 = vpack.c.b16 %v1048, %v1047
        %v1064 = vpack.c.b16 %v1050, %v1049
        %v1065 = vpack.c.b16 %v1052, %v1051
        %v1066 = vpack.c.b16 %v1054, %v1053
        %v1067 = vpack.c.b16 %v1056, %v1055
        %v1068 = vpack.c.b16 %v1058, %v1057
        %v1069 = vpack.c.b16 %v1060, %v1059
        %v1070 = vpack.c.b16 %v1062, %v1061
        %1079 = vmatprep.subr.bf16.mxu0 0
        %1080 = vmatpush1.bf16.msra.mxu0 %v1063
        %1081 = vmatprep.subr.bf16.mxu0 0
        %1082 = vmatpush1.bf16.msra.mxu0 %v1064
        %1083 = vmatprep.subr.bf16.mxu0 0
        %1084 = vmatpush1.bf16.msra.mxu0 %v1065
        %1085 = vmatprep.subr.bf16.mxu0 0
        %1086 = vmatpush1.bf16.msra.mxu0 %v1066
        %1087 = vmatprep.subr.bf16.mxu0 0
        %1088 = vmatpush1.bf16.msra.mxu0 %v1067
        %1089 = vmatprep.subr.bf16.mxu0 0
        %1090 = vmatpush1.bf16.msra.mxu0 %v1068
        %1091 = vmatprep.subr.bf16.mxu0 0
        %1092 = vmatpush1.bf16.msra.mxu0 %v1069
        %1093 = vmatprep.subr.bf16.mxu0 0
        %1094 = vmatpush1.bf16.msra.mxu0 %v1070
        %1095 = vmatprep.subr.bf16.mxu0 0
        %1096 = vmatpush1.bf16.msra.mxu0 0
        %1097 = vmatprep.subr.bf16.mxu0 0
        %1098 = vmatpush1.bf16.msra.mxu0 0
        %1099 = vmatprep.subr.bf16.mxu0 0
        %1100 = vmatpush1.bf16.msra.mxu0 0
        %1101 = vmatprep.subr.bf16.mxu0 0
        %1102 = vmatpush1.bf16.msra.mxu0 0
        %1103 = vmatprep.subr.bf16.mxu0 0
        %1104 = vmatpush1.bf16.msra.mxu0 0
        %1105 = vmatprep.subr.bf16.mxu0 0
        %1106 = vmatpush1.bf16.msra.mxu0 0
        %1107 = vmatprep.subr.bf16.mxu0 0
        %1108 = vmatpush1.bf16.msra.mxu0 0
        %1109 = vmatprep.subr.bf16.mxu0 0
        %1110 = vmatpush1.bf16.msra.mxu0 0
        %1111 = vmatprep.mubr.bf16.mxu0 0
        %1112 = vmatmul.mubr.bf16.gmra.mrb[0].mxu0 %v1007
        %v1113 = vpop.f32.mrb[0].mxu0
        %v1114 = vadd.f32 %v1029, %v1113
        %v1115 = vpop.f32.mrb[0].mxu0
        %v1116 = vpop.f32.mrb[0].mxu0
        %v1117 = vpop.f32.mrb[0].mxu0
        %1118 = vdwg.mxu0
        %1119 = vst [vmem:[%s217] sm:$0x3] %v1114
        %s1120 = sand.u32 %s137, 1
        %s1121 = scalar_lea.sflag [#allocation4], %s1120
        %s1122 = sand.u32 %s137, 1
        %s1123 = smul.addr %s1122, 2
        %s1124 = scalar_lea.vmem [#allocation3], %s1123
        // Predicated region
        $region41: #{tpu_custom_call.1} parent=39 // pred_check
          %p1125 = pneg %p147
        $region42: #{tpu_custom_call.1} parent=39 // pred_check_branch
          %1127 = sbr.rel (%p1125) target = $region44
        $region43: #{tpu_custom_call.1} parent=39 // pred_region
          %s1129 = ssub.s32 32, 32
          %1130 = vsyncadd %s1121, %s1129
          %s1131 = smul.addr %s19, 32
          %s1132 = scalar_lea.hbm %s5, %s1131
          %s1134 = sshll.u32 %s1124, 4
          %s1135 = int_to_ptr.vmem [resolvable:$true] %s1134
          %1137 = dma.vmem_to_hbm [thread:$0]  %s1135, 32, %s1132, %s1121
        $region44: #{tpu_custom_call.1} parent=39 // pred_fallthru
          _
      $region40: #{tpu_custom_call.1} parent=5 // pred_fallthru
        _
      %p1138 = scmp.le.s32.totalorder 2, %s14
      // Predicated region
      $region45: #{tpu_custom_call.1} parent=5 // pred_check
        %p1139 = pneg %p1138
      $region46: #{tpu_custom_call.1} parent=5 // pred_check_branch
        %1141 = sbr.rel (%p1139) target = $region48
      $region47: #{tpu_custom_call.1} parent=5 // pred_region
        %s1142 = ssub.s32 %s14, 2
        // Predicated region
        $region49: #{tpu_custom_call.1} parent=47 // pred_check
          %p1143 = pneg %p153
        $region50: #{tpu_custom_call.1} parent=47 // pred_check_branch
          %1145 = sbr.rel (%p1143) target = $region52
        $region51: #{tpu_custom_call.1} parent=47 // pred_region
          %s1146 = sand.u32 %s138, 1
          %s1147 = scalar_lea.sflag [#allocation4], %s1146
          %s1148 = sand.u32 %s138, 1
          %s1149 = smul.addr %s1148, 2
          %s1150 = scalar_lea.vmem [#allocation3], %s1149
          %1151 = dma.done %s1147, 32
        $region52: #{tpu_custom_call.1} parent=47 // pred_fallthru
          _
      $region48: #{tpu_custom_call.1} parent=5 // pred_fallthru
        _
    $region6: #{tpu_custom_call.1} parent=1 // loop_footer
      %s18 = sadd.s32 1, %s14
    $region7: #{tpu_custom_call.1} parent=1 // loop_footer_branch
      %13 = sbr.rel target = $region3
    $region8: #{tpu_custom_call.1} parent=1 // loop_exit
      _
    %1152 = vsyncpa [#allocation4], 1
    %s1153 = scalar_lea.sflag [#allocation4], 1
    %1154 = vsyncpa %s1153, 1

</llo_original>
